<compile_context>
chip_gen: v7x
topology: tpu7x:2x2x1
jax: 0.10.0
libtpu: 0.0.40
codegen_flags: <defaults>
</compile_context>

<pallas_src>
import math

import jax
import jax.numpy as jnp
from jax import lax
from jax.experimental import pallas as pl
from jax.experimental.pallas import tpu as pltpu

_SQRT_HALF = 0.7071067811865476  # 1/sqrt(2)
_ROWS = 24                       # hard-coded in the PyTorch forward
_FEATS = 45                      # hard-coded in the PyTorch forward (net: 45->32->45)
_HID = 32


def _gelu_exact(x):
    """Exact (erf-based) GELU — matches torch.nn.GELU() default."""
    return 0.5 * x * (1.0 + lax.erf(x * _SQRT_HALF))


def mlp_kernel(x_ref, w1_ref, b1_ref, w2_ref, b2_ref, o_ref):
    B, F, R = x_ref.shape            # (B, 45, 24): feature-major, row-minor
    inv_n = 1.0 / float(F * R)

    x = x_ref[...]                                           # (B, 45, 24)

    # ---- instance norm over all 1080 values, vectorized over batch ----------
    # lane reduce then sublane reduce; keepdims so the (B,1,1) stats broadcast.
    mean = jnp.sum(jnp.sum(x, axis=2, keepdims=True), axis=1, keepdims=True) * inv_n
    xc = x - mean
    var = jnp.sum(jnp.sum(xc * xc, axis=2, keepdims=True), axis=1, keepdims=True) * inv_n
    vpe = var + 1e-5                 # torch.var(..., unbiased=False) + eps
    inv_st = lax.rsqrt(vpe)          # one EUP rsqrt per batch element
    st = vpe * inv_st                # == sqrt(var + eps), kept for the de-norm
    xn = xc * inv_st                 # VPU multiply instead of 1080 divides

    # ---- net, batched over B: y = GELU(W2 @ GELU(W1 @ x + b1) + b2) ---------
    # Weights stay in torch (out, in) layout; contracting their "in" axis with
    # the feature (sublane) axis of xn realizes the 24x45 relabel implicitly,
    # so no transpose is ever materialized.
    w1 = jnp.broadcast_to(w1_ref[...], (B,) + tuple(w1_ref.shape))   # (B, 32, 45)
    w2 = jnp.broadcast_to(w2_ref[...], (B,) + tuple(w2_ref.shape))   # (B, 45, 32)

    h = jnp.einsum("bnf,bfr->bnr", w1, xn,
                   preferred_element_type=jnp.float32,
                   precision=lax.Precision.HIGHEST)                  # (B, 32, 24)
    h = _gelu_exact(h + b1_ref[...])                                 # b1: (1, 32, 1)

    y = jnp.einsum("bmn,bnr->bmr", w2, h,
                   preferred_element_type=jnp.float32,
                   precision=lax.Precision.HIGHEST)                  # (B, 45, 24)
    y = _gelu_exact(y + b2_ref[...])                                 # b2: (1, 45, 1)

    # ---- de-normalize with the per-batch scalar stats ------------------------
    o_ref[...] = (y * st + mean).astype(o_ref.dtype)


def mlp_forward(seq_endogenous_x, x_time, y_time, params, *, pred_len):
    """Pallas implementation of MLP.forward (use_glaff=False, use_norm=True)."""
    del x_time, y_time               # only consumed by the (disabled) GLAFF plugin
    B, L, C = seq_endogenous_x.shape
    assert C == 1 and L == _ROWS * _FEATS, (B, L, C)
    # The torch de-normalization broadcasts per-batch stats over pred_len steps
    # of the 1080-long output; it only type-checks when pred_len == 1080.
    assert pred_len == L, pred_len

    # (B,1080,1) -> (B,45,24): free reshape of contiguous memory (no copy,
    # no transpose).  Element (b, f, r) == x[b, f*24 + r, 0].
    x = seq_endogenous_x.reshape(B, _FEATS, _ROWS)

    out = pl.pallas_call(
        mlp_kernel,
        out_shape=jax.ShapeDtypeStruct((B, _FEATS, _ROWS), jnp.float32),
        # No grid: the whole problem (~10 KB) sits in VMEM for one invocation,
        # so there is no pipeline / double-buffering machinery at all.
        in_specs=[pl.BlockSpec(memory_space=pltpu.MemorySpace.VMEM)] * 5,
        out_specs=pl.BlockSpec(memory_space=pltpu.MemorySpace.VMEM),
    )(x, params["w1"], params["b1"], params["w2"], params["b2"])

    # (B,45,24) -> (B,1080,1): free reshape; then the last pred_len steps.
    y = out.reshape(B, L, 1)
    return y[:, -pred_len:, :]


def init_params(key):
    """Deterministic nn.Linear-style init, kept in torch (out, in) layout."""
    k1, k2, k3, k4 = jax.random.split(key, 4)

    def unif(k, shape, bound):
        return jax.random.uniform(k, shape, jnp.float32, -bound, bound)

    bd1 = 1.0 / math.sqrt(float(_FEATS))   # Linear(45, 32)
    bd2 = 1.0 / math.sqrt(float(_HID))     # Linear(32, 45)
    return dict(
        w1=unif(k1, (_HID, _FEATS), bd1),   # torch Linear(45,32).weight  (out, in)
        b1=unif(k2, (1, _HID, 1), bd1),     # bias, pre-shaped for (B, 32, 24) add
        w2=unif(k3, (_FEATS, _HID), bd2),   # torch Linear(32,45).weight  (out, in)
        b2=unif(k4, (1, _FEATS, 1), bd2),   # bias, pre-shaped for (B, 45, 24) add
    )


def reference(x, params, *, pred_len):
    """Pure-JAX op-for-op replica of the PyTorch forward (use_norm, no GLAFF)."""
    B = x.shape[0]
    mean = jnp.mean(x, axis=1, keepdims=True)                 # (B,1,1)
    xc = x - mean
    var = jnp.mean(xc * xc, axis=1, keepdims=True)            # unbiased=False
    st = jnp.sqrt(var + 1e-5)
    xn = xc / st

    z = jnp.transpose(xn, (0, 2, 1)).reshape(B, _FEATS, _ROWS)
    z = jnp.transpose(z, (0, 2, 1)).reshape(B * _ROWS, _FEATS)

    hp = lax.Precision.HIGHEST
    w1 = params["w1"].T                       # (45, 32)
    w2 = params["w2"].T                       # (32, 45)
    b1 = params["b1"].reshape(1, _HID)
    b2 = params["b2"].reshape(1, _FEATS)
    h = _gelu_exact(jnp.dot(z, w1, precision=hp) + b1)
    o = _gelu_exact(jnp.dot(h, w2, precision=hp) + b2)

    o = o.reshape(B, _ROWS, _FEATS)
    o = jnp.transpose(o, (0, 2, 1)).reshape(B, 1, _ROWS * _FEATS)
    o = jnp.transpose(o, (0, 2, 1))                           # (B, 1080, 1)
    o = o * st[:, 0, :][:, None, :] + mean[:, 0, :][:, None, :]
    return o[:, -pred_len:, :]


if __name__ == "__main__":
    # Shapes implied by the module: the forward hard-codes 45*24 = 1080 time
    # steps of one endogenous variable; pred_len must equal 1080 for the
    # use_norm de-normalization broadcast to be valid.
    B = 2
    SEQ_LEN = _ROWS * _FEATS      # 1080
    PRED_LEN = SEQ_LEN
    TIME_FEATS = 4

    key = jax.random.PRNGKey(0)
    kx, kt1, kt2, kp = jax.random.split(key, 4)
    seq_endogenous_x = jax.random.normal(kx, (B, SEQ_LEN, 1), jnp.float32)
    x_time = jax.random.normal(kt1, (B, SEQ_LEN, TIME_FEATS), jnp.float32)   # unused
    y_time = jax.random.normal(kt2, (B, PRED_LEN, TIME_FEATS), jnp.float32)  # unused
    params = init_params(kp)

    fwd = jax.jit(mlp_forward, static_argnames=("pred_len",))
    y = jax.block_until_ready(
        fwd(seq_endogenous_x, x_time, y_time, params, pred_len=PRED_LEN))
    assert y.shape == (B, PRED_LEN, 1), y.shape

    y_ref = reference(seq_endogenous_x, params, pred_len=PRED_LEN)
    max_err = float(jnp.max(jnp.abs(y - y_ref)))
    assert jnp.allclose(y, y_ref, atol=2e-3, rtol=2e-3), max_err

    print("KERNEL_OK")
</pallas_src>

<mosaic_0001>
module attributes {stable_mosaic.version = 11 : i64} {
  func.func @mlp_kernel(%arg0: memref<2x45x24xf32, #tpu.memory_space<vmem>>, %arg1: memref<32x45xf32, #tpu.memory_space<vmem>>, %arg2: memref<1x32x1xf32, #tpu.memory_space<vmem>>, %arg3: memref<45x32xf32, #tpu.memory_space<vmem>>, %arg4: memref<1x45x1xf32, #tpu.memory_space<vmem>>, %arg5: memref<2x45x24xf32, #tpu.memory_space<vmem>>) attributes {dimension_semantics = [], scalar_prefetch = 0 : i64, scratch_operands = 0 : i64, tpu.core_type = #tpu.core_type<tc>} {
    %c0 = arith.constant 0 : index
    %c0_0 = arith.constant 0 : index
    %c0_1 = arith.constant 0 : index
    %0 = vector.load %arg0[%c0, %c0_0, %c0_1] : memref<2x45x24xf32, #tpu.memory_space<vmem>>, vector<2x45x24xf32>
    %cst = arith.constant dense<0.000000e+00> : vector<2x45xf32>
    %1 = vector.multi_reduction <add>, %0, %cst [2] : vector<2x45x24xf32> to vector<2x45xf32>
    %2 = vector.shape_cast %1 : vector<2x45xf32> to vector<2x45x1xf32>
    %cst_2 = arith.constant dense<0.000000e+00> : vector<2x1xf32>
    %3 = vector.multi_reduction <add>, %2, %cst_2 [1] : vector<2x45x1xf32> to vector<2x1xf32>
    %4 = vector.shape_cast %3 : vector<2x1xf32> to vector<2x1x1xf32>
    %cst_3 = arith.constant 9.25925909E-4 : f32
    %5 = vector.broadcast %cst_3 : f32 to vector<2x1x1xf32>
    %6 = arith.mulf %4, %5 : vector<2x1x1xf32>
    %7 = vector.broadcast %6 : vector<2x1x1xf32> to vector<2x45x24xf32>
    %8 = arith.subf %0, %7 : vector<2x45x24xf32>
    %9 = arith.mulf %8, %8 : vector<2x45x24xf32>
    %cst_4 = arith.constant dense<0.000000e+00> : vector<2x45xf32>
    %10 = vector.multi_reduction <add>, %9, %cst_4 [2] : vector<2x45x24xf32> to vector<2x45xf32>
    %11 = vector.shape_cast %10 : vector<2x45xf32> to vector<2x45x1xf32>
    %cst_5 = arith.constant dense<0.000000e+00> : vector<2x1xf32>
    %12 = vector.multi_reduction <add>, %11, %cst_5 [1] : vector<2x45x1xf32> to vector<2x1xf32>
    %13 = vector.shape_cast %12 : vector<2x1xf32> to vector<2x1x1xf32>
    %cst_6 = arith.constant 9.25925909E-4 : f32
    %14 = vector.broadcast %cst_6 : f32 to vector<2x1x1xf32>
    %15 = arith.mulf %13, %14 : vector<2x1x1xf32>
    %cst_7 = arith.constant 9.99999974E-6 : f32
    %16 = vector.broadcast %cst_7 : f32 to vector<2x1x1xf32>
    %17 = arith.addf %15, %16 : vector<2x1x1xf32>
    %18 = math.rsqrt %17 : vector<2x1x1xf32>
    %19 = arith.mulf %17, %18 : vector<2x1x1xf32>
    %20 = vector.broadcast %18 : vector<2x1x1xf32> to vector<2x45x24xf32>
    %21 = arith.mulf %8, %20 : vector<2x45x24xf32>
    %c0_8 = arith.constant 0 : index
    %c0_9 = arith.constant 0 : index
    %22 = vector.load %arg1[%c0_8, %c0_9] : memref<32x45xf32, #tpu.memory_space<vmem>>, vector<32x45xf32>
    %23 = vector.shape_cast %22 : vector<32x45xf32> to vector<1x32x45xf32>
    %24 = vector.broadcast %23 : vector<1x32x45xf32> to vector<2x32x45xf32>
    %c0_10 = arith.constant 0 : index
    %c0_11 = arith.constant 0 : index
    %25 = vector.load %arg3[%c0_10, %c0_11] : memref<45x32xf32, #tpu.memory_space<vmem>>, vector<45x32xf32>
    %26 = vector.shape_cast %25 : vector<45x32xf32> to vector<1x45x32xf32>
    %27 = vector.broadcast %26 : vector<1x45x32xf32> to vector<2x45x32xf32>
    "tpu.trace_start"() <{level = 10 : i32, message = "bnf,bfr->bnr"}> : () -> ()
    %cst_12 = arith.constant dense<0.000000e+00> : vector<2x32x24xf32>
    %28 = tpu.matmul %24, %21, %cst_12 {dimension_numbers = #tpu.dot_dimension_numbers<[2], [1], [1], [2], [0, 0, 0, 1, 1, 2], [0], [0]>, precision = #tpu.contract_precision<fp32>} : vector<2x32x45xf32>, vector<2x45x24xf32>, vector<2x32x24xf32> -> vector<2x32x24xf32>
    "tpu.trace_stop"() : () -> ()
    %c0_13 = arith.constant 0 : index
    %c0_14 = arith.constant 0 : index
    %c0_15 = arith.constant 0 : index
    %29 = vector.load %arg2[%c0_13, %c0_14, %c0_15] : memref<1x32x1xf32, #tpu.memory_space<vmem>>, vector<1x32x1xf32>
    %30 = vector.broadcast %29 : vector<1x32x1xf32> to vector<2x32x24xf32>
    %31 = arith.addf %28, %30 : vector<2x32x24xf32>
    %cst_16 = arith.constant 5.000000e-01 : f32
    %32 = vector.broadcast %cst_16 : f32 to vector<2x32x24xf32>
    %33 = arith.mulf %32, %31 : vector<2x32x24xf32>
    %cst_17 = arith.constant 0.707106769 : f32
    %34 = vector.broadcast %cst_17 : f32 to vector<2x32x24xf32>
    %35 = arith.mulf %31, %34 : vector<2x32x24xf32>
    %36 = math.erf %35 : vector<2x32x24xf32>
    %cst_18 = arith.constant 1.000000e+00 : f32
    %37 = vector.broadcast %cst_18 : f32 to vector<2x32x24xf32>
    %38 = arith.addf %37, %36 : vector<2x32x24xf32>
    %39 = arith.mulf %33, %38 : vector<2x32x24xf32>
    "tpu.trace_start"() <{level = 10 : i32, message = "bmn,bnr->bmr"}> : () -> ()
    %cst_19 = arith.constant dense<0.000000e+00> : vector<2x45x24xf32>
    %40 = tpu.matmul %27, %39, %cst_19 {dimension_numbers = #tpu.dot_dimension_numbers<[2], [1], [1], [2], [0, 0, 0, 1, 1, 2], [0], [0]>, precision = #tpu.contract_precision<fp32>} : vector<2x45x32xf32>, vector<2x32x24xf32>, vector<2x45x24xf32> -> vector<2x45x24xf32>
    "tpu.trace_stop"() : () -> ()
    %c0_20 = arith.constant 0 : index
    %c0_21 = arith.constant 0 : index
    %c0_22 = arith.constant 0 : index
    %41 = vector.load %arg4[%c0_20, %c0_21, %c0_22] : memref<1x45x1xf32, #tpu.memory_space<vmem>>, vector<1x45x1xf32>
    %42 = vector.broadcast %41 : vector<1x45x1xf32> to vector<2x45x24xf32>
    %43 = arith.addf %40, %42 : vector<2x45x24xf32>
    %cst_23 = arith.constant 5.000000e-01 : f32
    %44 = vector.broadcast %cst_23 : f32 to vector<2x45x24xf32>
    %45 = arith.mulf %44, %43 : vector<2x45x24xf32>
    %cst_24 = arith.constant 0.707106769 : f32
    %46 = vector.broadcast %cst_24 : f32 to vector<2x45x24xf32>
    %47 = arith.mulf %43, %46 : vector<2x45x24xf32>
    %48 = math.erf %47 : vector<2x45x24xf32>
    %cst_25 = arith.constant 1.000000e+00 : f32
    %49 = vector.broadcast %cst_25 : f32 to vector<2x45x24xf32>
    %50 = arith.addf %49, %48 : vector<2x45x24xf32>
    %51 = arith.mulf %45, %50 : vector<2x45x24xf32>
    %52 = vector.broadcast %19 : vector<2x1x1xf32> to vector<2x45x24xf32>
    %53 = arith.mulf %51, %52 : vector<2x45x24xf32>
    %54 = vector.broadcast %6 : vector<2x1x1xf32> to vector<2x45x24xf32>
    %55 = arith.addf %53, %54 : vector<2x45x24xf32>
    %c0_26 = arith.constant 0 : index
    %c0_27 = arith.constant 0 : index
    %c0_28 = arith.constant 0 : index
    %56 = vector.load %arg5[%c0_26, %c0_27, %c0_28] : memref<2x45x24xf32, #tpu.memory_space<vmem>>, vector<2x45x24xf32>
    tpu.vector_store %arg5[%c0_26, %c0_27, %c0_28], %55 {strides = array<i32>} : memref<2x45x24xf32, #tpu.memory_space<vmem>>, vector<2x45x24xf32>,
    return
  }
}

</mosaic_0001>

<llo_original>
// kernel: mlp_forward.1
$region0: #{mlp_forward.1}
  #allocation0 [shape = 'u32[]', space=smem, size = 0x4, offset = 0x4, fixed_abs, tag = 'smem constant byte address 0x4 - core index']
  #allocation1 [shape = 'u32[144,128]{1,0:T(1,128)}', space=vmem, size = 0x12000, scoped, tag = 'internal scratch']
  %s0 = inlined_call_operand.vmem [shape: f32[2,45,24], index: 0, kind: input, shape index: {}]
  %s1 = inlined_call_operand.vmem [shape: f32[32,45], index: 1, kind: input, shape index: {}]
  %s2 = inlined_call_operand.vmem [shape: f32[1,32,1], index: 2, kind: input, shape index: {}]
  %s3 = inlined_call_operand.vmem [shape: f32[45,32], index: 3, kind: input, shape index: {}]
  %s4 = inlined_call_operand.vmem [shape: f32[1,45,1], index: 4, kind: input, shape index: {}]
  %s5 = inlined_call_operand.vmem [shape: f32[2,45,24], index: 5, kind: output, shape index: {}]
  %s6 = sld [smem:[#allocation0]]
  $region30: #{mlp_forward.1} parent=0
    _
  %s8 = ssub.s32 1, %s6
  %s9 = scalar_select 0, %s8, %s6
  // Predicated region
  $region2: #{mlp_forward.1} parent=0 // pred_check
    _
  $region3: #{mlp_forward.1} parent=0 // pred_check_branch
    %11 = sbr.rel (0) target = $region5
  $region4: #{mlp_forward.1} parent=0 // pred_region
    _
  $region5: #{mlp_forward.1} parent=0 // pred_fallthru
    _
  // Predicated region
  $region6: #{mlp_forward.1} parent=0 // pred_check
    _
  $region7: #{mlp_forward.1} parent=0 // pred_check_branch
    %13 = sbr.rel (0) target = $region9
  $region8: #{mlp_forward.1} parent=0 // pred_region
    _
  $region9: #{mlp_forward.1} parent=0 // pred_fallthru
    _
  // Predicated region
  $region10: #{mlp_forward.1} parent=0 // pred_check
    _
  $region11: #{mlp_forward.1} parent=0 // pred_check_branch
    %15 = sbr.rel (0) target = $region13
  $region12: #{mlp_forward.1} parent=0 // pred_region
    _
  $region13: #{mlp_forward.1} parent=0 // pred_fallthru
    _
  // Predicated region
  $region14: #{mlp_forward.1} parent=0 // pred_check
    _
  $region15: #{mlp_forward.1} parent=0 // pred_check_branch
    %17 = sbr.rel (0) target = $region17
  $region16: #{mlp_forward.1} parent=0 // pred_region
    _
  $region17: #{mlp_forward.1} parent=0 // pred_fallthru
    _
  // Predicated region
  $region18: #{mlp_forward.1} parent=0 // pred_check
    _
  $region19: #{mlp_forward.1} parent=0 // pred_check_branch
    %19 = sbr.rel (0) target = $region21
  $region20: #{mlp_forward.1} parent=0 // pred_region
    _
  $region21: #{mlp_forward.1} parent=0 // pred_fallthru
    _
  %v20 = vld [vmem:[%s0] sm:$0xff]
  %v21 = vld [vmem:[%s0 + $0x8] sm:$0xff]
  %v22 = vld [vmem:[%s0 + $0x10] sm:$0xff]
  %v23 = vld [vmem:[%s0 + $0x18] sm:$0xff]
  %v24 = vld [vmem:[%s0 + $0x20] sm:$0xff]
  %v25 = vld [vmem:[%s0 + $0x28] sm:$0x1f]
  %v26 = vld [vmem:[%s0 + $0x30] sm:$0xff]
  %v27 = vld [vmem:[%s0 + $0x38] sm:$0xff]
  %v28 = vld [vmem:[%s0 + $0x40] sm:$0xff]
  %v29 = vld [vmem:[%s0 + $0x48] sm:$0xff]
  %v30 = vld [vmem:[%s0 + $0x50] sm:$0xff]
  %v31 = vld [vmem:[%s0 + $0x58] sm:$0x1f]
  %vm32 = vcmask 195584
  %v33 = vsel %vm32, %v20, 0.0
  %34 = vadd.xlane.f32.xlu0 %v33
  %v35 = vpop.xlane.xlu0 %34
  %v36 = vsel %vm32, %v21, 0.0
  %37 = vadd.xlane.f32.xlu0 %v36
  %v38 = vpop.xlane.xlu0 %37
  %v39 = vsel %vm32, %v22, 0.0
  %40 = vadd.xlane.f32.xlu0 %v39
  %v41 = vpop.xlane.xlu0 %40
  %v42 = vsel %vm32, %v23, 0.0
  %43 = vadd.xlane.f32.xlu0 %v42
  %v44 = vpop.xlane.xlu0 %43
  %v45 = vsel %vm32, %v24, 0.0
  %46 = vadd.xlane.f32.xlu0 %v45
  %v47 = vpop.xlane.xlu0 %46
  %vm48 = vcmask 192512
  %v49 = vsel %vm48, %v25, 0.0
  %50 = vadd.xlane.f32.xlu0 %v49
  %v51 = vpop.xlane.xlu0 %50
  %v52 = vsel %vm32, %v26, 0.0
  %53 = vadd.xlane.f32.xlu0 %v52
  %v54 = vpop.xlane.xlu0 %53
  %v55 = vsel %vm32, %v27, 0.0
  %56 = vadd.xlane.f32.xlu0 %v55
  %v57 = vpop.xlane.xlu0 %56
  %v58 = vsel %vm32, %v28, 0.0
  %59 = vadd.xlane.f32.xlu0 %v58
  %v60 = vpop.xlane.xlu0 %59
  %v61 = vsel %vm32, %v29, 0.0
  %62 = vadd.xlane.f32.xlu0 %v61
  %v63 = vpop.xlane.xlu0 %62
  %v64 = vsel %vm32, %v30, 0.0
  %65 = vadd.xlane.f32.xlu0 %v64
  %v66 = vpop.xlane.xlu0 %65
  %v67 = vsel %vm48, %v31, 0.0
  %68 = vadd.xlane.f32.xlu0 %v67
  %v69 = vpop.xlane.xlu0 %68
  %v70 = vadd.f32 %v35, %v38
  %v71 = vadd.f32 %v70, %v41
  %v72 = vadd.f32 %v71, %v44
  %v73 = vadd.f32 %v72, %v47
  %vm74 = vcmask 1044480
  %v75 = vsel %vm74, %v51, 0.0
  %v76 = vadd.f32 %v73, %v75
  %v77 = vrot.slane %v76, 4
  %v78 = vadd.f32 %v76, %v77
  %v79 = vrot.slane %v78, 2
  %v80 = vadd.f32 %v78, %v79
  %v81 = vrot.slane %v80, 1
  %v82 = vadd.f32 %v80, %v81
  %v83 = vadd.f32 %v54, %v57
  %v84 = vadd.f32 %v83, %v60
  %v85 = vadd.f32 %v84, %v63
  %v86 = vadd.f32 %v85, %v66
  %v87 = vsel %vm74, %v69, 0.0
  %v88 = vadd.f32 %v86, %v87
  %v89 = vrot.slane %v88, 4
  %v90 = vadd.f32 %v88, %v89
  %v91 = vrot.slane %v90, 2
  %v92 = vadd.f32 %v90, %v91
  %v93 = vrot.slane %v92, 1
  %v94 = vadd.f32 %v92, %v93
  %v95 = vmul.f32 %v82, 0.0009259259
  %v96 = vmul.f32 %v94, 0.0009259259
  %v97 = vsub.f32 %v20, %v95
  %v98 = vsub.f32 %v21, %v95
  %v99 = vsub.f32 %v22, %v95
  %v100 = vsub.f32 %v23, %v95
  %v101 = vsub.f32 %v24, %v95
  %v102 = vsub.f32 %v25, %v95
  %v103 = vsub.f32 %v26, %v96
  %v104 = vsub.f32 %v27, %v96
  %v105 = vsub.f32 %v28, %v96
  %v106 = vsub.f32 %v29, %v96
  %v107 = vsub.f32 %v30, %v96
  %v108 = vsub.f32 %v31, %v96
  %v109 = vmul.f32 %v97, %v97
  %v110 = vmul.f32 %v98, %v98
  %v111 = vmul.f32 %v99, %v99
  %v112 = vmul.f32 %v100, %v100
  %v113 = vmul.f32 %v101, %v101
  %v114 = vmul.f32 %v102, %v102
  %v115 = vmul.f32 %v103, %v103
  %v116 = vmul.f32 %v104, %v104
  %v117 = vmul.f32 %v105, %v105
  %v118 = vmul.f32 %v106, %v106
  %v119 = vmul.f32 %v107, %v107
  %v120 = vmul.f32 %v108, %v108
  %v121 = vsel %vm32, %v109, 0.0
  %122 = vadd.xlane.f32.xlu0 %v121
  %v123 = vpop.xlane.xlu0 %122
  %v124 = vsel %vm32, %v110, 0.0
  %125 = vadd.xlane.f32.xlu0 %v124
  %v126 = vpop.xlane.xlu0 %125
  %v127 = vsel %vm32, %v111, 0.0
  %128 = vadd.xlane.f32.xlu0 %v127
  %v129 = vpop.xlane.xlu0 %128
  %v130 = vsel %vm32, %v112, 0.0
  %131 = vadd.xlane.f32.xlu0 %v130
  %v132 = vpop.xlane.xlu0 %131
  %v133 = vsel %vm32, %v113, 0.0
  %134 = vadd.xlane.f32.xlu0 %v133
  %v135 = vpop.xlane.xlu0 %134
  %v136 = vsel %vm48, %v114, 0.0
  %137 = vadd.xlane.f32.xlu0 %v136
  %v138 = vpop.xlane.xlu0 %137
  %v139 = vsel %vm32, %v115, 0.0
  %140 = vadd.xlane.f32.xlu0 %v139
  %v141 = vpop.xlane.xlu0 %140
  %v142 = vsel %vm32, %v116, 0.0
  %143 = vadd.xlane.f32.xlu0 %v142
  %v144 = vpop.xlane.xlu0 %143
  %v145 = vsel %vm32, %v117, 0.0
  %146 = vadd.xlane.f32.xlu0 %v145
  %v147 = vpop.xlane.xlu0 %146
  %v148 = vsel %vm32, %v118, 0.0
  %149 = vadd.xlane.f32.xlu0 %v148
  %v150 = vpop.xlane.xlu0 %149
  %v151 = vsel %vm32, %v119, 0.0
  %152 = vadd.xlane.f32.xlu0 %v151
  %v153 = vpop.xlane.xlu0 %152
  %v154 = vsel %vm48, %v120, 0.0
  %155 = vadd.xlane.f32.xlu0 %v154
  %v156 = vpop.xlane.xlu0 %155
  %v157 = vadd.f32 %v123, %v126
  %v158 = vadd.f32 %v157, %v129
  %v159 = vadd.f32 %v158, %v132
  %v160 = vadd.f32 %v159, %v135
  %v161 = vsel %vm74, %v138, 0.0
  %v162 = vadd.f32 %v160, %v161
  %v163 = vrot.slane %v162, 4
  %v164 = vadd.f32 %v162, %v163
  %v165 = vrot.slane %v164, 2
  %v166 = vadd.f32 %v164, %v165
  %v167 = vrot.slane %v166, 1
  %v168 = vadd.f32 %v166, %v167
  %v169 = vadd.f32 %v141, %v144
  %v170 = vadd.f32 %v169, %v147
  %v171 = vadd.f32 %v170, %v150
  %v172 = vadd.f32 %v171, %v153
  %v173 = vsel %vm74, %v156, 0.0
  %v174 = vadd.f32 %v172, %v173
  %v175 = vrot.slane %v174, 4
  %v176 = vadd.f32 %v174, %v175
  %v177 = vrot.slane %v176, 2
  %v178 = vadd.f32 %v176, %v177
  %v179 = vrot.slane %v178, 1
  %v180 = vadd.f32 %v178, %v179
  %v181 = vmul.f32 %v168, 0.0009259259
  %v182 = vmul.f32 %v180, 0.0009259259
  %v183 = vadd.f32 %v181, 1e-05
  %v184 = vadd.f32 %v182, 1e-05
  %v185 = vrsqrt.pop %v183
  %v186 = vrsqrt.pop %v184
  %v187 = vmul.f32 %v183, %v185
  %v188 = vmul.f32 %v184, %v186
  %v189 = vmul.f32 %v97, %v185
  %v190 = vmul.f32 %v98, %v185
  %v191 = vmul.f32 %v99, %v185
  %v192 = vmul.f32 %v100, %v185
  %v193 = vmul.f32 %v101, %v185
  %v194 = vmul.f32 %v102, %v185
  %v195 = vmul.f32 %v103, %v186
  %v196 = vmul.f32 %v104, %v186
  %v197 = vmul.f32 %v105, %v186
  %v198 = vmul.f32 %v106, %v186
  %v199 = vmul.f32 %v107, %v186
  %v200 = vmul.f32 %v108, %v186
  %v201 = vld [vmem:[%s1] sm:$0xff]
  %v202 = vld [vmem:[%s1 + $0x8] sm:$0xff]
  %v203 = vld [vmem:[%s1 + $0x10] sm:$0xff]
  %v204 = vld [vmem:[%s1 + $0x18] sm:$0xff]
  %v205 = vld [vmem:[%s3] sm:$0xff]
  %v206 = vld [vmem:[%s3 + $0x8] sm:$0xff]
  %v207 = vld [vmem:[%s3 + $0x10] sm:$0xff]
  %v208 = vld [vmem:[%s3 + $0x18] sm:$0xff]
  %v209 = vld [vmem:[%s3 + $0x20] sm:$0xff]
  %v210 = vld [vmem:[%s3 + $0x28] sm:$0x1f]
  %v211 = vld [vmem:[%s2] sm:$0xff]
  %v212 = vld [vmem:[%s2 + $0x8] sm:$0xff]
  %v213 = vld [vmem:[%s2 + $0x10] sm:$0xff]
  %v214 = vld [vmem:[%s2 + $0x18] sm:$0xff]
  %216 = vset.pattern.permute.xlu0 0
  %217 = vperm.xlu0 %216, %v211
  %v218 = vpop.permute.xlu0 %217
  %221 = vset.pattern.permute.xlu0 0
  %222 = vperm.xlu0 %221, %v212
  %v223 = vpop.permute.xlu0 %222
  %226 = vset.pattern.permute.xlu0 0
  %227 = vperm.xlu0 %226, %v213
  %v228 = vpop.permute.xlu0 %227
  %231 = vset.pattern.permute.xlu0 0
  %232 = vperm.xlu0 %231, %v214
  %v233 = vpop.permute.xlu0 %232
  %vm235 = vcmask 367616
  %v237 = vsel %vm235, %v201, 0
  %v240 = vsel %vm235, %v202, 0
  %v243 = vsel %vm235, %v203, 0
  %v246 = vsel %vm235, %v204, 0
  %v249 = vsel %vm74, %v194, 0
  %251 = vmatprep.subr.mxu0 0.0
  %v252 = vand.u32 %v189, 4294901760
  %253 = vmatpush1.msra.mxu0 %v252
  %254 = vmatprep.subr.mxu0 0.0
  %v255 = vand.u32 %v190, 4294901760
  %256 = vmatpush1.msra.mxu0 %v255
  %257 = vmatprep.subr.mxu0 0.0
  %v258 = vand.u32 %v191, 4294901760
  %259 = vmatpush1.msra.mxu0 %v258
  %260 = vmatprep.subr.mxu0 0.0
  %v261 = vand.u32 %v192, 4294901760
  %262 = vmatpush1.msra.mxu0 %v261
  %263 = vmatprep.subr.mxu0 0.0
  %v264 = vand.u32 %v193, 4294901760
  %265 = vmatpush1.msra.mxu0 %v264
  %266 = vmatprep.subr.mxu0 0.0
  %v267 = vand.u32 %v249, 4294901760
  %268 = vmatpush1.msra.mxu0 %v267
  %269 = vmatprep.subr.mxu0 0.0
  %270 = vmatpush1.msra.mxu0 0.0
  %271 = vmatprep.subr.mxu0 0.0
  %272 = vmatpush1.msra.mxu0 0.0
  %273 = vmatprep.subr.mxu0 0.0
  %274 = vmatpush1.msra.mxu0 0.0
  %275 = vmatprep.subr.mxu0 0.0
  %276 = vmatpush1.msra.mxu0 0.0
  %277 = vmatprep.subr.mxu0 0.0
  %278 = vmatpush1.msra.mxu0 0.0
  %279 = vmatprep.subr.mxu0 0.0
  %280 = vmatpush1.msra.mxu0 0.0
  %281 = vmatprep.subr.mxu0 0.0
  %282 = vmatpush1.msra.mxu0 0.0
  %283 = vmatprep.subr.mxu0 0.0
  %284 = vmatpush1.msra.mxu0 0.0
  %285 = vmatprep.subr.mxu0 0.0
  %286 = vmatpush1.msra.mxu0 0.0
  %287 = vmatprep.subr.mxu0 0.0
  %288 = vmatpush1.msra.mxu0 0.0
  %289 = vmatprep.subr.mxu0 0.0
  %290 = vmatpush1.msra.mxu0 0.0
  %291 = vmatprep.subr.mxu0 0.0
  %292 = vmatpush1.msra.mxu0 0.0
  %293 = vmatprep.subr.mxu0 0.0
  %294 = vmatpush1.msra.mxu0 0.0
  %295 = vmatprep.subr.mxu0 0.0
  %296 = vmatpush1.msra.mxu0 0.0
  %297 = vmatprep.subr.mxu0 0.0
  %298 = vmatpush1.msra.mxu0 0.0
  %299 = vmatprep.subr.mxu0 0.0
  %300 = vmatpush1.msra.mxu0 0.0
  %301 = vmatprep.subr.mxu0 0.0
  %302 = vmatpush1.msra.mxu0 0.0
  %303 = vmatprep.subr.mxu0 0.0
  %304 = vmatpush1.msra.mxu0 0.0
  %305 = vmatprep.subr.mxu0 0.0
  %306 = vmatpush1.msra.mxu0 0.0
  %307 = vmatprep.subr.mxu0 0.0
  %308 = vmatpush1.msra.mxu0 0.0
  %309 = vmatprep.subr.mxu0 0.0
  %310 = vmatpush1.msra.mxu0 0.0
  %311 = vmatprep.subr.mxu0 0.0
  %312 = vmatpush1.msra.mxu0 0.0
  %313 = vmatprep.subr.mxu0 0.0
  %314 = vmatpush1.msra.mxu0 0.0
  %315 = vmatprep.subr.mxu0 0.0
  %316 = vmatpush1.msra.mxu0 0.0
  %317 = vmatprep.subr.mxu0 0.0
  %318 = vmatpush1.msra.mxu0 0.0
  %319 = vmatprep.subr.mxu0 0.0
  %320 = vmatpush1.msra.mxu0 0.0
  %321 = vmatprep.mubr.f32.mxu0 0.0
  %v322 = vand.u32 %v237, 4294901760
  %v323 = vsub.f32 %v237, %v322
  %v324 = vand.u32 %v323, 4294901760
  %v325 = vsub.f32 %v323, %v324
  %v326 = vand.u32 %v325, 4294901760
  %327 = vmatmul.mubr.f32.gmra.mrb[0].mxu0 %v326
  %v328 = vpop.f32.mrb[0].mxu0
  %v329 = vadd.f32 %v218, %v328
  %v330 = vpop.f32.mrb[0].mxu0
  %331 = vmatprep.mubr.f32.mxu0 0.0
  %v332 = vand.u32 %v240, 4294901760
  %v333 = vsub.f32 %v240, %v332
  %v334 = vand.u32 %v333, 4294901760
  %v335 = vsub.f32 %v333, %v334
  %v336 = vand.u32 %v335, 4294901760
  %337 = vmatmul.mubr.f32.gmra.mrb[0].mxu0 %v336
  %v338 = vpop.f32.mrb[0].mxu0
  %v339 = vadd.f32 %v223, %v338
  %v340 = vpop.f32.mrb[0].mxu0
  %341 = vmatprep.mubr.f32.mxu0 0.0
  %v342 = vand.u32 %v243, 4294901760
  %v343 = vsub.f32 %v243, %v342
  %v344 = vand.u32 %v343, 4294901760
  %v345 = vsub.f32 %v343, %v344
  %v346 = vand.u32 %v345, 4294901760
  %347 = vmatmul.mubr.f32.gmra.mrb[0].mxu0 %v346
  %v348 = vpop.f32.mrb[0].mxu0
  %v349 = vadd.f32 %v228, %v348
  %v350 = vpop.f32.mrb[0].mxu0
  %351 = vmatprep.mubr.f32.mxu0 0.0
  %v352 = vand.u32 %v246, 4294901760
  %v353 = vsub.f32 %v246, %v352
  %v354 = vand.u32 %v353, 4294901760
  %v355 = vsub.f32 %v353, %v354
  %v356 = vand.u32 %v355, 4294901760
  %357 = vmatmul.mubr.f32.gmra.mrb[0].mxu0 %v356
  %v358 = vpop.f32.mrb[0].mxu0
  %v359 = vadd.f32 %v233, %v358
  %v360 = vpop.f32.mrb[0].mxu0
  %361 = vdwg.mxu0
  %362 = vmatprep.subr.mxu0 0.0
  %v363 = vand.u32 %v189, 4294901760
  %v364 = vsub.f32 %v189, %v363
  %v365 = vand.u32 %v364, 4294901760
  %v366 = vsub.f32 %v364, %v365
  %v367 = vand.u32 %v366, 4294901760
  %368 = vmatpush1.msra.mxu0 %v367
  %369 = vmatprep.subr.mxu0 0.0
  %v370 = vand.u32 %v190, 4294901760
  %v371 = vsub.f32 %v190, %v370
  %v372 = vand.u32 %v371, 4294901760
  %v373 = vsub.f32 %v371, %v372
  %v374 = vand.u32 %v373, 4294901760
  %375 = vmatpush1.msra.mxu0 %v374
  %376 = vmatprep.subr.mxu0 0.0
  %v377 = vand.u32 %v191, 4294901760
  %v378 = vsub.f32 %v191, %v377
  %v379 = vand.u32 %v378, 4294901760
  %v380 = vsub.f32 %v378, %v379
  %v381 = vand.u32 %v380, 4294901760
  %382 = vmatpush1.msra.mxu0 %v381
  %383 = vmatprep.subr.mxu0 0.0
  %v384 = vand.u32 %v192, 4294901760
  %v385 = vsub.f32 %v192, %v384
  %v386 = vand.u32 %v385, 4294901760
  %v387 = vsub.f32 %v385, %v386
  %v388 = vand.u32 %v387, 4294901760
  %389 = vmatpush1.msra.mxu0 %v388
  %390 = vmatprep.subr.mxu0 0.0
  %v391 = vand.u32 %v193, 4294901760
  %v392 = vsub.f32 %v193, %v391
  %v393 = vand.u32 %v392, 4294901760
  %v394 = vsub.f32 %v392, %v393
  %v395 = vand.u32 %v394, 4294901760
  %396 = vmatpush1.msra.mxu0 %v395
  %397 = vmatprep.subr.mxu0 0.0
  %v398 = vand.u32 %v249, 4294901760
  %v399 = vsub.f32 %v249, %v398
  %v400 = vand.u32 %v399, 4294901760
  %v401 = vsub.f32 %v399, %v400
  %v402 = vand.u32 %v401, 4294901760
  %403 = vmatpush1.msra.mxu0 %v402
  %404 = vmatprep.subr.mxu0 0.0
  %405 = vmatpush1.msra.mxu0 0.0
  %406 = vmatprep.subr.mxu0 0.0
  %407 = vmatpush1.msra.mxu0 0.0
  %408 = vmatprep.subr.mxu0 0.0
  %409 = vmatpush1.msra.mxu0 0.0
  %410 = vmatprep.subr.mxu0 0.0
  %411 = vmatpush1.msra.mxu0 0.0
  %412 = vmatprep.subr.mxu0 0.0
  %413 = vmatpush1.msra.mxu0 0.0
  %414 = vmatprep.subr.mxu0 0.0
  %415 = vmatpush1.msra.mxu0 0.0
  %416 = vmatprep.subr.mxu0 0.0
  %417 = vmatpush1.msra.mxu0 0.0
  %418 = vmatprep.subr.mxu0 0.0
  %419 = vmatpush1.msra.mxu0 0.0
  %420 = vmatprep.subr.mxu0 0.0
  %421 = vmatpush1.msra.mxu0 0.0
  %422 = vmatprep.subr.mxu0 0.0
  %423 = vmatpush1.msra.mxu0 0.0
  %424 = vmatprep.subr.mxu0 0.0
  %425 = vmatpush1.msra.mxu0 0.0
  %426 = vmatprep.subr.mxu0 0.0
  %427 = vmatpush1.msra.mxu0 0.0
  %428 = vmatprep.subr.mxu0 0.0
  %429 = vmatpush1.msra.mxu0 0.0
  %430 = vmatprep.subr.mxu0 0.0
  %431 = vmatpush1.msra.mxu0 0.0
  %432 = vmatprep.subr.mxu0 0.0
  %433 = vmatpush1.msra.mxu0 0.0
  %434 = vmatprep.subr.mxu0 0.0
  %435 = vmatpush1.msra.mxu0 0.0
  %436 = vmatprep.subr.mxu0 0.0
  %437 = vmatpush1.msra.mxu0 0.0
  %438 = vmatprep.subr.mxu0 0.0
  %439 = vmatpush1.msra.mxu0 0.0
  %440 = vmatprep.subr.mxu0 0.0
  %441 = vmatpush1.msra.mxu0 0.0
  %442 = vmatprep.subr.mxu0 0.0
  %443 = vmatpush1.msra.mxu0 0.0
  %444 = vmatprep.subr.mxu0 0.0
  %445 = vmatpush1.msra.mxu0 0.0
  %446 = vmatprep.subr.mxu0 0.0
  %447 = vmatpush1.msra.mxu0 0.0
  %448 = vmatprep.subr.mxu0 0.0
  %449 = vmatpush1.msra.mxu0 0.0
  %450 = vmatprep.subr.mxu0 0.0
  %451 = vmatpush1.msra.mxu0 0.0
  %452 = vmatprep.subr.mxu0 0.0
  %453 = vmatpush1.msra.mxu0 0.0
  %454 = vmatprep.subr.mxu0 0.0
  %455 = vmatpush1.msra.mxu0 0.0
  %456 = vmatprep.mubr.f32.mxu0 0.0
  %v457 = vand.u32 %v237, 4294901760
  %458 = vmatmul.mubr.f32.gmra.mrb[0].mxu0 %v457
  %v459 = vpop.f32.mrb[0].mxu0
  %v460 = vadd.f32 %v329, %v459
  %v461 = vpop.f32.mrb[0].mxu0
  %462 = vmatprep.mubr.f32.mxu0 0.0
  %v463 = vand.u32 %v240, 4294901760
  %464 = vmatmul.mubr.f32.gmra.mrb[0].mxu0 %v463
  %v465 = vpop.f32.mrb[0].mxu0
  %v466 = vadd.f32 %v339, %v465
  %v467 = vpop.f32.mrb[0].mxu0
  %468 = vmatprep.mubr.f32.mxu0 0.0
  %v469 = vand.u32 %v243, 4294901760
  %470 = vmatmul.mubr.f32.gmra.mrb[0].mxu0 %v469
  %v471 = vpop.f32.mrb[0].mxu0
  %v472 = vadd.f32 %v349, %v471
  %v473 = vpop.f32.mrb[0].mxu0
  %474 = vmatprep.mubr.f32.mxu0 0.0
  %v475 = vand.u32 %v246, 4294901760
  %476 = vmatmul.mubr.f32.gmra.mrb[0].mxu0 %v475
  %v477 = vpop.f32.mrb[0].mxu0
  %v478 = vadd.f32 %v359, %v477
  %v479 = vpop.f32.mrb[0].mxu0
  %480 = vdwg.mxu0
  %481 = vmatprep.subr.mxu0 0.0
  %v482 = vand.u32 %v189, 4294901760
  %v483 = vsub.f32 %v189, %v482
  %484 = vmatpush1.msra.mxu0 %v483
  %485 = vmatprep.subr.mxu0 0.0
  %v486 = vand.u32 %v190, 4294901760
  %v487 = vsub.f32 %v190, %v486
  %488 = vmatpush1.msra.mxu0 %v487
  %489 = vmatprep.subr.mxu0 0.0
  %v490 = vand.u32 %v191, 4294901760
  %v491 = vsub.f32 %v191, %v490
  %492 = vmatpush1.msra.mxu0 %v491
  %493 = vmatprep.subr.mxu0 0.0
  %v494 = vand.u32 %v192, 4294901760
  %v495 = vsub.f32 %v192, %v494
  %496 = vmatpush1.msra.mxu0 %v495
  %497 = vmatprep.subr.mxu0 0.0
  %v498 = vand.u32 %v193, 4294901760
  %v499 = vsub.f32 %v193, %v498
  %500 = vmatpush1.msra.mxu0 %v499
  %501 = vmatprep.subr.mxu0 0.0
  %v502 = vand.u32 %v249, 4294901760
  %v503 = vsub.f32 %v249, %v502
  %504 = vmatpush1.msra.mxu0 %v503
  %505 = vmatprep.subr.mxu0 0.0
  %506 = vmatpush1.msra.mxu0 0.0
  %507 = vmatprep.subr.mxu0 0.0
  %508 = vmatpush1.msra.mxu0 0.0
  %509 = vmatprep.subr.mxu0 0.0
  %510 = vmatpush1.msra.mxu0 0.0
  %511 = vmatprep.subr.mxu0 0.0
  %512 = vmatpush1.msra.mxu0 0.0
  %513 = vmatprep.subr.mxu0 0.0
  %514 = vmatpush1.msra.mxu0 0.0
  %515 = vmatprep.subr.mxu0 0.0
  %516 = vmatpush1.msra.mxu0 0.0
  %517 = vmatprep.subr.mxu0 0.0
  %518 = vmatpush1.msra.mxu0 0.0
  %519 = vmatprep.subr.mxu0 0.0
  %520 = vmatpush1.msra.mxu0 0.0
  %521 = vmatprep.subr.mxu0 0.0
  %522 = vmatpush1.msra.mxu0 0.0
  %523 = vmatprep.subr.mxu0 0.0
  %524 = vmatpush1.msra.mxu0 0.0
  %525 = vmatprep.subr.mxu0 0.0
  %526 = vmatpush1.msra.mxu0 0.0
  %527 = vmatprep.subr.mxu0 0.0
  %528 = vmatpush1.msra.mxu0 0.0
  %529 = vmatprep.subr.mxu0 0.0
  %530 = vmatpush1.msra.mxu0 0.0
  %531 = vmatprep.subr.mxu0 0.0
  %532 = vmatpush1.msra.mxu0 0.0
  %533 = vmatprep.subr.mxu0 0.0
  %534 = vmatpush1.msra.mxu0 0.0
  %535 = vmatprep.subr.mxu0 0.0
  %536 = vmatpush1.msra.mxu0 0.0
  %537 = vmatprep.subr.mxu0 0.0
  %538 = vmatpush1.msra.mxu0 0.0
  %539 = vmatprep.subr.mxu0 0.0
  %540 = vmatpush1.msra.mxu0 0.0
  %541 = vmatprep.subr.mxu0 0.0
  %542 = vmatpush1.msra.mxu0 0.0
  %543 = vmatprep.subr.mxu0 0.0
  %544 = vmatpush1.msra.mxu0 0.0
  %545 = vmatprep.subr.mxu0 0.0
  %546 = vmatpush1.msra.mxu0 0.0
  %547 = vmatprep.subr.mxu0 0.0
  %548 = vmatpush1.msra.mxu0 0.0
  %549 = vmatprep.subr.mxu0 0.0
  %550 = vmatpush1.msra.mxu0 0.0
  %551 = vmatprep.subr.mxu0 0.0
  %552 = vmatpush1.msra.mxu0 0.0
  %553 = vmatprep.subr.mxu0 0.0
  %554 = vmatpush1.msra.mxu0 0.0
  %555 = vmatprep.subr.mxu0 0.0
  %556 = vmatpush1.msra.mxu0 0.0
  %557 = vmatprep.mubr.f32.mxu0 0.0
  %v558 = vand.u32 %v237, 4294901760
  %v559 = vsub.f32 %v237, %v558
  %560 = vmatmul.mubr.f32.gmra.mrb[0].mxu0 %v559
  %v561 = vpop.f32.mrb[0].mxu0
  %v562 = vadd.f32 %v460, %v561
  %v563 = vpop.f32.mrb[0].mxu0
  %564 = vmatprep.mubr.f32.mxu0 0.0
  %v565 = vand.u32 %v240, 4294901760
  %v566 = vsub.f32 %v240, %v565
  %567 = vmatmul.mubr.f32.gmra.mrb[0].mxu0 %v566
  %v568 = vpop.f32.mrb[0].mxu0
  %v569 = vadd.f32 %v466, %v568
  %v570 = vpop.f32.mrb[0].mxu0
  %571 = vmatprep.mubr.f32.mxu0 0.0
  %v572 = vand.u32 %v243, 4294901760
  %v573 = vsub.f32 %v243, %v572
  %574 = vmatmul.mubr.f32.gmra.mrb[0].mxu0 %v573
  %v575 = vpop.f32.mrb[0].mxu0
  %v576 = vadd.f32 %v472, %v575
  %v577 = vpop.f32.mrb[0].mxu0
  %578 = vmatprep.mubr.f32.mxu0 0.0
  %v579 = vand.u32 %v246, 4294901760
  %v580 = vsub.f32 %v246, %v579
  %581 = vmatmul.mubr.f32.gmra.mrb[0].mxu0 %v580
  %v582 = vpop.f32.mrb[0].mxu0
  %v583 = vadd.f32 %v478, %v582
  %v584 = vpop.f32.mrb[0].mxu0
  %585 = vdwg.mxu0
  %586 = vmatprep.subr.mxu0 0.0
  %v587 = vand.u32 %v189, 4294901760
  %588 = vmatpush1.msra.mxu0 %v587
  %589 = vmatprep.subr.mxu0 0.0
  %v590 = vand.u32 %v190, 4294901760
  %591 = vmatpush1.msra.mxu0 %v590
  %592 = vmatprep.subr.mxu0 0.0
  %v593 = vand.u32 %v191, 4294901760
  %594 = vmatpush1.msra.mxu0 %v593
  %595 = vmatprep.subr.mxu0 0.0
  %v596 = vand.u32 %v192, 4294901760
  %597 = vmatpush1.msra.mxu0 %v596
  %598 = vmatprep.subr.mxu0 0.0
  %v599 = vand.u32 %v193, 4294901760
  %600 = vmatpush1.msra.mxu0 %v599
  %601 = vmatprep.subr.mxu0 0.0
  %v602 = vand.u32 %v249, 4294901760
  %603 = vmatpush1.msra.mxu0 %v602
  %604 = vmatprep.subr.mxu0 0.0
  %605 = vmatpush1.msra.mxu0 0.0
  %606 = vmatprep.subr.mxu0 0.0
  %607 = vmatpush1.msra.mxu0 0.0
  %608 = vmatprep.subr.mxu0 0.0
  %609 = vmatpush1.msra.mxu0 0.0
  %610 = vmatprep.subr.mxu0 0.0
  %611 = vmatpush1.msra.mxu0 0.0
  %612 = vmatprep.subr.mxu0 0.0
  %613 = vmatpush1.msra.mxu0 0.0
  %614 = vmatprep.subr.mxu0 0.0
  %615 = vmatpush1.msra.mxu0 0.0
  %616 = vmatprep.subr.mxu0 0.0
  %617 = vmatpush1.msra.mxu0 0.0
  %618 = vmatprep.subr.mxu0 0.0
  %619 = vmatpush1.msra.mxu0 0.0
  %620 = vmatprep.subr.mxu0 0.0
  %621 = vmatpush1.msra.mxu0 0.0
  %622 = vmatprep.subr.mxu0 0.0
  %623 = vmatpush1.msra.mxu0 0.0
  %624 = vmatprep.subr.mxu0 0.0
  %625 = vmatpush1.msra.mxu0 0.0
  %626 = vmatprep.subr.mxu0 0.0
  %627 = vmatpush1.msra.mxu0 0.0
  %628 = vmatprep.subr.mxu0 0.0
  %629 = vmatpush1.msra.mxu0 0.0
  %630 = vmatprep.subr.mxu0 0.0
  %631 = vmatpush1.msra.mxu0 0.0
  %632 = vmatprep.subr.mxu0 0.0
  %633 = vmatpush1.msra.mxu0 0.0
  %634 = vmatprep.subr.mxu0 0.0
  %635 = vmatpush1.msra.mxu0 0.0
  %636 = vmatprep.subr.mxu0 0.0
  %637 = vmatpush1.msra.mxu0 0.0
  %638 = vmatprep.subr.mxu0 0.0
  %639 = vmatpush1.msra.mxu0 0.0
  %640 = vmatprep.subr.mxu0 0.0
  %641 = vmatpush1.msra.mxu0 0.0
  %642 = vmatprep.subr.mxu0 0.0
  %643 = vmatpush1.msra.mxu0 0.0
  %644 = vmatprep.subr.mxu0 0.0
  %645 = vmatpush1.msra.mxu0 0.0
  %646 = vmatprep.subr.mxu0 0.0
  %647 = vmatpush1.msra.mxu0 0.0
  %648 = vmatprep.subr.mxu0 0.0
  %649 = vmatpush1.msra.mxu0 0.0
  %650 = vmatprep.subr.mxu0 0.0
  %651 = vmatpush1.msra.mxu0 0.0
  %652 = vmatprep.subr.mxu0 0.0
  %653 = vmatpush1.msra.mxu0 0.0
  %654 = vmatprep.subr.mxu0 0.0
  %655 = vmatpush1.msra.mxu0 0.0
  %656 = vmatprep.mubr.f32.mxu0 0.0
  %v657 = vand.u32 %v237, 4294901760
  %v658 = vsub.f32 %v237, %v657
  %v659 = vand.u32 %v658, 4294901760
  %660 = vmatmul.mubr.f32.gmra.mrb[0].mxu0 %v659
  %v661 = vpop.f32.mrb[0].mxu0
  %v662 = vadd.f32 %v562, %v661
  %v663 = vpop.f32.mrb[0].mxu0
  %664 = vmatprep.mubr.f32.mxu0 0.0
  %v665 = vand.u32 %v240, 4294901760
  %v666 = vsub.f32 %v240, %v665
  %v667 = vand.u32 %v666, 4294901760
  %668 = vmatmul.mubr.f32.gmra.mrb[0].mxu0 %v667
  %v669 = vpop.f32.mrb[0].mxu0
  %v670 = vadd.f32 %v569, %v669
  %v671 = vpop.f32.mrb[0].mxu0
  %672 = vmatprep.mubr.f32.mxu0 0.0
  %v673 = vand.u32 %v243, 4294901760
  %v674 = vsub.f32 %v243, %v673
  %v675 = vand.u32 %v674, 4294901760
  %676 = vmatmul.mubr.f32.gmra.mrb[0].mxu0 %v675
  %v677 = vpop.f32.mrb[0].mxu0
  %v678 = vadd.f32 %v576, %v677
  %v679 = vpop.f32.mrb[0].mxu0
  %680 = vmatprep.mubr.f32.mxu0 0.0
  %v681 = vand.u32 %v246, 4294901760
  %v682 = vsub.f32 %v246, %v681
  %v683 = vand.u32 %v682, 4294901760
  %684 = vmatmul.mubr.f32.gmra.mrb[0].mxu0 %v683
  %v685 = vpop.f32.mrb[0].mxu0
  %v686 = vadd.f32 %v583, %v685
  %v687 = vpop.f32.mrb[0].mxu0
  %688 = vdwg.mxu0
  %689 = vmatprep.subr.mxu0 0.0
  %v690 = vand.u32 %v189, 4294901760
  %v691 = vsub.f32 %v189, %v690
  %v692 = vand.u32 %v691, 4294901760
  %693 = vmatpush1.msra.mxu0 %v692
  %694 = vmatprep.subr.mxu0 0.0
  %v695 = vand.u32 %v190, 4294901760
  %v696 = vsub.f32 %v190, %v695
  %v697 = vand.u32 %v696, 4294901760
  %698 = vmatpush1.msra.mxu0 %v697
  %699 = vmatprep.subr.mxu0 0.0
  %v700 = vand.u32 %v191, 4294901760
  %v701 = vsub.f32 %v191, %v700
  %v702 = vand.u32 %v701, 4294901760
  %703 = vmatpush1.msra.mxu0 %v702
  %704 = vmatprep.subr.mxu0 0.0
  %v705 = vand.u32 %v192, 4294901760
  %v706 = vsub.f32 %v192, %v705
  %v707 = vand.u32 %v706, 4294901760
  %708 = vmatpush1.msra.mxu0 %v707
  %709 = vmatprep.subr.mxu0 0.0
  %v710 = vand.u32 %v193, 4294901760
  %v711 = vsub.f32 %v193, %v710
  %v712 = vand.u32 %v711, 4294901760
  %713 = vmatpush1.msra.mxu0 %v712
  %714 = vmatprep.subr.mxu0 0.0
  %v715 = vand.u32 %v249, 4294901760
  %v716 = vsub.f32 %v249, %v715
  %v717 = vand.u32 %v716, 4294901760
  %718 = vmatpush1.msra.mxu0 %v717
  %719 = vmatprep.subr.mxu0 0.0
  %720 = vmatpush1.msra.mxu0 0.0
  %721 = vmatprep.subr.mxu0 0.0
  %722 = vmatpush1.msra.mxu0 0.0
  %723 = vmatprep.subr.mxu0 0.0
  %724 = vmatpush1.msra.mxu0 0.0
  %725 = vmatprep.subr.mxu0 0.0
  %726 = vmatpush1.msra.mxu0 0.0
  %727 = vmatprep.subr.mxu0 0.0
  %728 = vmatpush1.msra.mxu0 0.0
  %729 = vmatprep.subr.mxu0 0.0
  %730 = vmatpush1.msra.mxu0 0.0
  %731 = vmatprep.subr.mxu0 0.0
  %732 = vmatpush1.msra.mxu0 0.0
  %733 = vmatprep.subr.mxu0 0.0
  %734 = vmatpush1.msra.mxu0 0.0
  %735 = vmatprep.subr.mxu0 0.0
  %736 = vmatpush1.msra.mxu0 0.0
  %737 = vmatprep.subr.mxu0 0.0
  %738 = vmatpush1.msra.mxu0 0.0
  %739 = vmatprep.subr.mxu0 0.0
  %740 = vmatpush1.msra.mxu0 0.0
  %741 = vmatprep.subr.mxu0 0.0
  %742 = vmatpush1.msra.mxu0 0.0
  %743 = vmatprep.subr.mxu0 0.0
  %744 = vmatpush1.msra.mxu0 0.0
  %745 = vmatprep.subr.mxu0 0.0
  %746 = vmatpush1.msra.mxu0 0.0
  %747 = vmatprep.subr.mxu0 0.0
  %748 = vmatpush1.msra.mxu0 0.0
  %749 = vmatprep.subr.mxu0 0.0
  %750 = vmatpush1.msra.mxu0 0.0
  %751 = vmatprep.subr.mxu0 0.0
  %752 = vmatpush1.msra.mxu0 0.0
  %753 = vmatprep.subr.mxu0 0.0
  %754 = vmatpush1.msra.mxu0 0.0
  %755 = vmatprep.subr.mxu0 0.0
  %756 = vmatpush1.msra.mxu0 0.0
  %757 = vmatprep.subr.mxu0 0.0
  %758 = vmatpush1.msra.mxu0 0.0
  %759 = vmatprep.subr.mxu0 0.0
  %760 = vmatpush1.msra.mxu0 0.0
  %761 = vmatprep.subr.mxu0 0.0
  %762 = vmatpush1.msra.mxu0 0.0
  %763 = vmatprep.subr.mxu0 0.0
  %764 = vmatpush1.msra.mxu0 0.0
  %765 = vmatprep.subr.mxu0 0.0
  %766 = vmatpush1.msra.mxu0 0.0
  %767 = vmatprep.subr.mxu0 0.0
  %768 = vmatpush1.msra.mxu0 0.0
  %769 = vmatprep.subr.mxu0 0.0
  %770 = vmatpush1.msra.mxu0 0.0
  %771 = vmatprep.mubr.f32.mxu0 0.0
  %v772 = vand.u32 %v237, 4294901760
  %773 = vmatmul.mubr.f32.gmra.mrb[0].mxu0 %v772
  %v774 = vpop.f32.mrb[0].mxu0
  %v775 = vadd.f32 %v662, %v774
  %v776 = vpop.f32.mrb[0].mxu0
  %777 = vmatprep.mubr.f32.mxu0 0.0
  %v778 = vand.u32 %v240, 4294901760
  %779 = vmatmul.mubr.f32.gmra.mrb[0].mxu0 %v778
  %v780 = vpop.f32.mrb[0].mxu0
  %v781 = vadd.f32 %v670, %v780
  %v782 = vpop.f32.mrb[0].mxu0
  %783 = vmatprep.mubr.f32.mxu0 0.0
  %v784 = vand.u32 %v243, 4294901760
  %785 = vmatmul.mubr.f32.gmra.mrb[0].mxu0 %v784
  %v786 = vpop.f32.mrb[0].mxu0
  %v787 = vadd.f32 %v678, %v786
  %v788 = vpop.f32.mrb[0].mxu0
  %789 = vmatprep.mubr.f32.mxu0 0.0
  %v790 = vand.u32 %v246, 4294901760
  %791 = vmatmul.mubr.f32.gmra.mrb[0].mxu0 %v790
  %v792 = vpop.f32.mrb[0].mxu0
  %v793 = vadd.f32 %v686, %v792
  %v794 = vpop.f32.mrb[0].mxu0
  %795 = vdwg.mxu0
  %796 = vmatprep.subr.mxu0 0.0
  %v797 = vand.u32 %v189, 4294901760
  %798 = vmatpush1.msra.mxu0 %v797
  %799 = vmatprep.subr.mxu0 0.0
  %v800 = vand.u32 %v190, 4294901760
  %801 = vmatpush1.msra.mxu0 %v800
  %802 = vmatprep.subr.mxu0 0.0
  %v803 = vand.u32 %v191, 4294901760
  %804 = vmatpush1.msra.mxu0 %v803
  %805 = vmatprep.subr.mxu0 0.0
  %v806 = vand.u32 %v192, 4294901760
  %807 = vmatpush1.msra.mxu0 %v806
  %808 = vmatprep.subr.mxu0 0.0
  %v809 = vand.u32 %v193, 4294901760
  %810 = vmatpush1.msra.mxu0 %v809
  %811 = vmatprep.subr.mxu0 0.0
  %v812 = vand.u32 %v249, 4294901760
  %813 = vmatpush1.msra.mxu0 %v812
  %814 = vmatprep.subr.mxu0 0.0
  %815 = vmatpush1.msra.mxu0 0.0
  %816 = vmatprep.subr.mxu0 0.0
  %817 = vmatpush1.msra.mxu0 0.0
  %818 = vmatprep.subr.mxu0 0.0
  %819 = vmatpush1.msra.mxu0 0.0
  %820 = vmatprep.subr.mxu0 0.0
  %821 = vmatpush1.msra.mxu0 0.0
  %822 = vmatprep.subr.mxu0 0.0
  %823 = vmatpush1.msra.mxu0 0.0
  %824 = vmatprep.subr.mxu0 0.0
  %825 = vmatpush1.msra.mxu0 0.0
  %826 = vmatprep.subr.mxu0 0.0
  %827 = vmatpush1.msra.mxu0 0.0
  %828 = vmatprep.subr.mxu0 0.0
  %829 = vmatpush1.msra.mxu0 0.0
  %830 = vmatprep.subr.mxu0 0.0
  %831 = vmatpush1.msra.mxu0 0.0
  %832 = vmatprep.subr.mxu0 0.0
  %833 = vmatpush1.msra.mxu0 0.0
  %834 = vmatprep.subr.mxu0 0.0
  %835 = vmatpush1.msra.mxu0 0.0
  %836 = vmatprep.subr.mxu0 0.0
  %837 = vmatpush1.msra.mxu0 0.0
  %838 = vmatprep.subr.mxu0 0.0
  %839 = vmatpush1.msra.mxu0 0.0
  %840 = vmatprep.subr.mxu0 0.0
  %841 = vmatpush1.msra.mxu0 0.0
  %842 = vmatprep.subr.mxu0 0.0
  %843 = vmatpush1.msra.mxu0 0.0
  %844 = vmatprep.subr.mxu0 0.0
  %845 = vmatpush1.msra.mxu0 0.0
  %846 = vmatprep.subr.mxu0 0.0
  %847 = vmatpush1.msra.mxu0 0.0
  %848 = vmatprep.subr.mxu0 0.0
  %849 = vmatpush1.msra.mxu0 0.0
  %850 = vmatprep.subr.mxu0 0.0
  %851 = vmatpush1.msra.mxu0 0.0
  %852 = vmatprep.subr.mxu0 0.0
  %853 = vmatpush1.msra.mxu0 0.0
  %854 = vmatprep.subr.mxu0 0.0
  %855 = vmatpush1.msra.mxu0 0.0
  %856 = vmatprep.subr.mxu0 0.0
  %857 = vmatpush1.msra.mxu0 0.0
  %858 = vmatprep.subr.mxu0 0.0
  %859 = vmatpush1.msra.mxu0 0.0
  %860 = vmatprep.subr.mxu0 0.0
  %861 = vmatpush1.msra.mxu0 0.0
  %862 = vmatprep.subr.mxu0 0.0
  %863 = vmatpush1.msra.mxu0 0.0
  %864 = vmatprep.subr.mxu0 0.0
  %865 = vmatpush1.msra.mxu0 0.0
  %866 = vmatprep.mubr.f32.mxu0 0.0
  %v867 = vand.u32 %v237, 4294901760
  %868 = vmatmul.mubr.f32.gmra.mrb[0].mxu0 %v867
  %v869 = vpop.f32.mrb[0].mxu0
  %v870 = vadd.f32 %v775, %v869
  %v871 = vpop.f32.mrb[0].mxu0
  %872 = vmatprep.mubr.f32.mxu0 0.0
  %v873 = vand.u32 %v240, 4294901760
  %874 = vmatmul.mubr.f32.gmra.mrb[0].mxu0 %v873
  %v875 = vpop.f32.mrb[0].mxu0
  %v876 = vadd.f32 %v781, %v875
  %v877 = vpop.f32.mrb[0].mxu0
  %878 = vmatprep.mubr.f32.mxu0 0.0
  %v879 = vand.u32 %v243, 4294901760
  %880 = vmatmul.mubr.f32.gmra.mrb[0].mxu0 %v879
  %v881 = vpop.f32.mrb[0].mxu0
  %v882 = vadd.f32 %v787, %v881
  %v883 = vpop.f32.mrb[0].mxu0
  %884 = vmatprep.mubr.f32.mxu0 0.0
  %v885 = vand.u32 %v246, 4294901760
  %886 = vmatmul.mubr.f32.gmra.mrb[0].mxu0 %v885
  %v887 = vpop.f32.mrb[0].mxu0
  %v888 = vadd.f32 %v793, %v887
  %v889 = vpop.f32.mrb[0].mxu0
  %890 = vdwg.mxu0
  %v892 = vsel %vm74, %v200, 0
  %894 = vmatprep.subr.mxu0 0.0
  %v895 = vand.u32 %v195, 4294901760
  %896 = vmatpush1.msra.mxu0 %v895
  %897 = vmatprep.subr.mxu0 0.0
  %v898 = vand.u32 %v196, 4294901760
  %899 = vmatpush1.msra.mxu0 %v898
  %900 = vmatprep.subr.mxu0 0.0
  %v901 = vand.u32 %v197, 4294901760
  %902 = vmatpush1.msra.mxu0 %v901
  %903 = vmatprep.subr.mxu0 0.0
  %v904 = vand.u32 %v198, 4294901760
  %905 = vmatpush1.msra.mxu0 %v904
  %906 = vmatprep.subr.mxu0 0.0
  %v907 = vand.u32 %v199, 4294901760
  %908 = vmatpush1.msra.mxu0 %v907
  %909 = vmatprep.subr.mxu0 0.0
  %v910 = vand.u32 %v892, 4294901760
  %911 = vmatpush1.msra.mxu0 %v910
  %912 = vmatprep.subr.mxu0 0.0
  %913 = vmatpush1.msra.mxu0 0.0
  %914 = vmatprep.subr.mxu0 0.0
  %915 = vmatpush1.msra.mxu0 0.0
  %916 = vmatprep.subr.mxu0 0.0
  %917 = vmatpush1.msra.mxu0 0.0
  %918 = vmatprep.subr.mxu0 0.0
  %919 = vmatpush1.msra.mxu0 0.0
  %920 = vmatprep.subr.mxu0 0.0
  %921 = vmatpush1.msra.mxu0 0.0
  %922 = vmatprep.subr.mxu0 0.0
  %923 = vmatpush1.msra.mxu0 0.0
  %924 = vmatprep.subr.mxu0 0.0
  %925 = vmatpush1.msra.mxu0 0.0
  %926 = vmatprep.subr.mxu0 0.0
  %927 = vmatpush1.msra.mxu0 0.0
  %928 = vmatprep.subr.mxu0 0.0
  %929 = vmatpush1.msra.mxu0 0.0
  %930 = vmatprep.subr.mxu0 0.0
  %931 = vmatpush1.msra.mxu0 0.0
  %932 = vmatprep.subr.mxu0 0.0
  %933 = vmatpush1.msra.mxu0 0.0
  %934 = vmatprep.subr.mxu0 0.0
  %935 = vmatpush1.msra.mxu0 0.0
  %936 = vmatprep.subr.mxu0 0.0
  %937 = vmatpush1.msra.mxu0 0.0
  %938 = vmatprep.subr.mxu0 0.0
  %939 = vmatpush1.msra.mxu0 0.0
  %940 = vmatprep.subr.mxu0 0.0
  %941 = vmatpush1.msra.mxu0 0.0
  %942 = vmatprep.subr.mxu0 0.0
  %943 = vmatpush1.msra.mxu0 0.0
  %944 = vmatprep.subr.mxu0 0.0
  %945 = vmatpush1.msra.mxu0 0.0
  %946 = vmatprep.subr.mxu0 0.0
  %947 = vmatpush1.msra.mxu0 0.0
  %948 = vmatprep.subr.mxu0 0.0
  %949 = vmatpush1.msra.mxu0 0.0
  %950 = vmatprep.subr.mxu0 0.0
  %951 = vmatpush1.msra.mxu0 0.0
  %952 = vmatprep.subr.mxu0 0.0
  %953 = vmatpush1.msra.mxu0 0.0
  %954 = vmatprep.subr.mxu0 0.0
  %955 = vmatpush1.msra.mxu0 0.0
  %956 = vmatprep.subr.mxu0 0.0
  %957 = vmatpush1.msra.mxu0 0.0
  %958 = vmatprep.subr.mxu0 0.0
  %959 = vmatpush1.msra.mxu0 0.0
  %960 = vmatprep.subr.mxu0 0.0
  %961 = vmatpush1.msra.mxu0 0.0
  %962 = vmatprep.subr.mxu0 0.0
  %963 = vmatpush1.msra.mxu0 0.0
  %964 = vmatprep.mubr.f32.mxu0 0.0
  %v965 = vand.u32 %v237, 4294901760
  %v966 = vsub.f32 %v237, %v965
  %v967 = vand.u32 %v966, 4294901760
  %v968 = vsub.f32 %v966, %v967
  %v969 = vand.u32 %v968, 4294901760
  %970 = vmatmul.mubr.f32.gmra.mrb[0].mxu0 %v969
  %v971 = vpop.f32.mrb[0].mxu0
  %v972 = vadd.f32 %v218, %v971
  %v973 = vpop.f32.mrb[0].mxu0
  %974 = vmatprep.mubr.f32.mxu0 0.0
  %v975 = vand.u32 %v240, 4294901760
  %v976 = vsub.f32 %v240, %v975
  %v977 = vand.u32 %v976, 4294901760
  %v978 = vsub.f32 %v976, %v977
  %v979 = vand.u32 %v978, 4294901760
  %980 = vmatmul.mubr.f32.gmra.mrb[0].mxu0 %v979
  %v981 = vpop.f32.mrb[0].mxu0
  %v982 = vadd.f32 %v223, %v981
  %v983 = vpop.f32.mrb[0].mxu0
  %984 = vmatprep.mubr.f32.mxu0 0.0
  %v985 = vand.u32 %v243, 4294901760
  %v986 = vsub.f32 %v243, %v985
  %v987 = vand.u32 %v986, 4294901760
  %v988 = vsub.f32 %v986, %v987
  %v989 = vand.u32 %v988, 4294901760
  %990 = vmatmul.mubr.f32.gmra.mrb[0].mxu0 %v989
  %v991 = vpop.f32.mrb[0].mxu0
  %v992 = vadd.f32 %v228, %v991
  %v993 = vpop.f32.mrb[0].mxu0
  %994 = vmatprep.mubr.f32.mxu0 0.0
  %v995 = vand.u32 %v246, 4294901760
  %v996 = vsub.f32 %v246, %v995
  %v997 = vand.u32 %v996, 4294901760
  %v998 = vsub.f32 %v996, %v997
  %v999 = vand.u32 %v998, 4294901760
  %1000 = vmatmul.mubr.f32.gmra.mrb[0].mxu0 %v999
  %v1001 = vpop.f32.mrb[0].mxu0
  %v1002 = vadd.f32 %v233, %v1001
  %v1003 = vpop.f32.mrb[0].mxu0
  %1004 = vdwg.mxu0
  %1005 = vmatprep.subr.mxu0 0.0
  %v1006 = vand.u32 %v195, 4294901760
  %v1007 = vsub.f32 %v195, %v1006
  %v1008 = vand.u32 %v1007, 4294901760
  %v1009 = vsub.f32 %v1007, %v1008
  %v1010 = vand.u32 %v1009, 4294901760
  %1011 = vmatpush1.msra.mxu0 %v1010
  %1012 = vmatprep.subr.mxu0 0.0
  %v1013 = vand.u32 %v196, 4294901760
  %v1014 = vsub.f32 %v196, %v1013
  %v1015 = vand.u32 %v1014, 4294901760
  %v1016 = vsub.f32 %v1014, %v1015
  %v1017 = vand.u32 %v1016, 4294901760
  %1018 = vmatpush1.msra.mxu0 %v1017
  %1019 = vmatprep.subr.mxu0 0.0
  %v1020 = vand.u32 %v197, 4294901760
  %v1021 = vsub.f32 %v197, %v1020
  %v1022 = vand.u32 %v1021, 4294901760
  %v1023 = vsub.f32 %v1021, %v1022
  %v1024 = vand.u32 %v1023, 4294901760
  %1025 = vmatpush1.msra.mxu0 %v1024
  %1026 = vmatprep.subr.mxu0 0.0
  %v1027 = vand.u32 %v198, 4294901760
  %v1028 = vsub.f32 %v198, %v1027
  %v1029 = vand.u32 %v1028, 4294901760
  %v1030 = vsub.f32 %v1028, %v1029
  %v1031 = vand.u32 %v1030, 4294901760
  %1032 = vmatpush1.msra.mxu0 %v1031
  %1033 = vmatprep.subr.mxu0 0.0
  %v1034 = vand.u32 %v199, 4294901760
  %v1035 = vsub.f32 %v199, %v1034
  %v1036 = vand.u32 %v1035, 4294901760
  %v1037 = vsub.f32 %v1035, %v1036
  %v1038 = vand.u32 %v1037, 4294901760
  %1039 = vmatpush1.msra.mxu0 %v1038
  %1040 = vmatprep.subr.mxu0 0.0
  %v1041 = vand.u32 %v892, 4294901760
  %v1042 = vsub.f32 %v892, %v1041
  %v1043 = vand.u32 %v1042, 4294901760
  %v1044 = vsub.f32 %v1042, %v1043
  %v1045 = vand.u32 %v1044, 4294901760
  %1046 = vmatpush1.msra.mxu0 %v1045
  %1047 = vmatprep.subr.mxu0 0.0
  %1048 = vmatpush1.msra.mxu0 0.0
  %1049 = vmatprep.subr.mxu0 0.0
  %1050 = vmatpush1.msra.mxu0 0.0
  %1051 = vmatprep.subr.mxu0 0.0
  %1052 = vmatpush1.msra.mxu0 0.0
  %1053 = vmatprep.subr.mxu0 0.0
  %1054 = vmatpush1.msra.mxu0 0.0
  %1055 = vmatprep.subr.mxu0 0.0
  %1056 = vmatpush1.msra.mxu0 0.0
  %1057 = vmatprep.subr.mxu0 0.0
  %1058 = vmatpush1.msra.mxu0 0.0
  %1059 = vmatprep.subr.mxu0 0.0
  %1060 = vmatpush1.msra.mxu0 0.0
  %1061 = vmatprep.subr.mxu0 0.0
  %1062 = vmatpush1.msra.mxu0 0.0
  %1063 = vmatprep.subr.mxu0 0.0
  %1064 = vmatpush1.msra.mxu0 0.0
  %1065 = vmatprep.subr.mxu0 0.0
  %1066 = vmatpush1.msra.mxu0 0.0
  %1067 = vmatprep.subr.mxu0 0.0
  %1068 = vmatpush1.msra.mxu0 0.0
  %1069 = vmatprep.subr.mxu0 0.0
  %1070 = vmatpush1.msra.mxu0 0.0
  %1071 = vmatprep.subr.mxu0 0.0
  %1072 = vmatpush1.msra.mxu0 0.0
  %1073 = vmatprep.subr.mxu0 0.0
  %1074 = vmatpush1.msra.mxu0 0.0
  %1075 = vmatprep.subr.mxu0 0.0
  %1076 = vmatpush1.msra.mxu0 0.0
  %1077 = vmatprep.subr.mxu0 0.0
  %1078 = vmatpush1.msra.mxu0 0.0
  %1079 = vmatprep.subr.mxu0 0.0
  %1080 = vmatpush1.msra.mxu0 0.0
  %1081 = vmatprep.subr.mxu0 0.0
  %1082 = vmatpush1.msra.mxu0 0.0
  %1083 = vmatprep.subr.mxu0 0.0
  %1084 = vmatpush1.msra.mxu0 0.0
  %1085 = vmatprep.subr.mxu0 0.0
  %1086 = vmatpush1.msra.mxu0 0.0
  %1087 = vmatprep.subr.mxu0 0.0
  %1088 = vmatpush1.msra.mxu0 0.0
  %1089 = vmatprep.subr.mxu0 0.0
  %1090 = vmatpush1.msra.mxu0 0.0
  %1091 = vmatprep.subr.mxu0 0.0
  %1092 = vmatpush1.msra.mxu0 0.0
  %1093 = vmatprep.subr.mxu0 0.0
  %1094 = vmatpush1.msra.mxu0 0.0
  %1095 = vmatprep.subr.mxu0 0.0
  %1096 = vmatpush1.msra.mxu0 0.0
  %1097 = vmatprep.subr.mxu0 0.0
  %1098 = vmatpush1.msra.mxu0 0.0
  %1099 = vmatprep.mubr.f32.mxu0 0.0
  %v1100 = vand.u32 %v237, 4294901760
  %1101 = vmatmul.mubr.f32.gmra.mrb[0].mxu0 %v1100
  %v1102 = vpop.f32.mrb[0].mxu0
  %v1103 = vadd.f32 %v972, %v1102
  %v1104 = vpop.f32.mrb[0].mxu0
  %1105 = vmatprep.mubr.f32.mxu0 0.0
  %v1106 = vand.u32 %v240, 4294901760
  %1107 = vmatmul.mubr.f32.gmra.mrb[0].mxu0 %v1106
  %v1108 = vpop.f32.mrb[0].mxu0
  %v1109 = vadd.f32 %v982, %v1108
  %v1110 = vpop.f32.mrb[0].mxu0
  %1111 = vmatprep.mubr.f32.mxu0 0.0
  %v1112 = vand.u32 %v243, 4294901760
  %1113 = vmatmul.mubr.f32.gmra.mrb[0].mxu0 %v1112
  %v1114 = vpop.f32.mrb[0].mxu0
  %v1115 = vadd.f32 %v992, %v1114
  %v1116 = vpop.f32.mrb[0].mxu0
  %1117 = vmatprep.mubr.f32.mxu0 0.0
  %v1118 = vand.u32 %v246, 4294901760
  %1119 = vmatmul.mubr.f32.gmra.mrb[0].mxu0 %v1118
  %v1120 = vpop.f32.mrb[0].mxu0
  %v1121 = vadd.f32 %v1002, %v1120
  %v1122 = vpop.f32.mrb[0].mxu0
  %1123 = vdwg.mxu0
  %1124 = vmatprep.subr.mxu0 0.0
  %v1125 = vand.u32 %v195, 4294901760
  %v1126 = vsub.f32 %v195, %v1125
  %1127 = vmatpush1.msra.mxu0 %v1126
  %1128 = vmatprep.subr.mxu0 0.0
  %v1129 = vand.u32 %v196, 4294901760
  %v1130 = vsub.f32 %v196, %v1129
  %1131 = vmatpush1.msra.mxu0 %v1130
  %1132 = vmatprep.subr.mxu0 0.0
  %v1133 = vand.u32 %v197, 4294901760
  %v1134 = vsub.f32 %v197, %v1133
  %1135 = vmatpush1.msra.mxu0 %v1134
  %1136 = vmatprep.subr.mxu0 0.0
  %v1137 = vand.u32 %v198, 4294901760
  %v1138 = vsub.f32 %v198, %v1137
  %1139 = vmatpush1.msra.mxu0 %v1138
  %1140 = vmatprep.subr.mxu0 0.0
  %v1141 = vand.u32 %v199, 4294901760
  %v1142 = vsub.f32 %v199, %v1141
  %1143 = vmatpush1.msra.mxu0 %v1142
  %1144 = vmatprep.subr.mxu0 0.0
  %v1145 = vand.u32 %v892, 4294901760
  %v1146 = vsub.f32 %v892, %v1145
  %1147 = vmatpush1.msra.mxu0 %v1146
  %1148 = vmatprep.subr.mxu0 0.0
  %1149 = vmatpush1.msra.mxu0 0.0
  %1150 = vmatprep.subr.mxu0 0.0
  %1151 = vmatpush1.msra.mxu0 0.0
  %1152 = vmatprep.subr.mxu0 0.0
  %1153 = vmatpush1.msra.mxu0 0.0
  %1154 = vmatprep.subr.mxu0 0.0
  %1155 = vmatpush1.msra.mxu0 0.0
  %1156 = vmatprep.subr.mxu0 0.0
  %1157 = vmatpush1.msra.mxu0 0.0
  %1158 = vmatprep.subr.mxu0 0.0
  %1159 = vmatpush1.msra.mxu0 0.0
  %1160 = vmatprep.subr.mxu0 0.0
  %1161 = vmatpush1.msra.mxu0 0.0
  %1162 = vmatprep.subr.mxu0 0.0
  %1163 = vmatpush1.msra.mxu0 0.0
  %1164 = vmatprep.subr.mxu0 0.0
  %1165 = vmatpush1.msra.mxu0 0.0
  %1166 = vmatprep.subr.mxu0 0.0
  %1167 = vmatpush1.msra.mxu0 0.0
  %1168 = vmatprep.subr.mxu0 0.0
  %1169 = vmatpush1.msra.mxu0 0.0
  %1170 = vmatprep.subr.mxu0 0.0
  %1171 = vmatpush1.msra.mxu0 0.0
  %1172 = vmatprep.subr.mxu0 0.0
  %1173 = vmatpush1.msra.mxu0 0.0
  %1174 = vmatprep.subr.mxu0 0.0
  %1175 = vmatpush1.msra.mxu0 0.0
  %1176 = vmatprep.subr.mxu0 0.0
  %1177 = vmatpush1.msra.mxu0 0.0
  %1178 = vmatprep.subr.mxu0 0.0
  %1179 = vmatpush1.msra.mxu0 0.0
  %1180 = vmatprep.subr.mxu0 0.0
  %1181 = vmatpush1.msra.mxu0 0.0
  %1182 = vmatprep.subr.mxu0 0.0
  %1183 = vmatpush1.msra.mxu0 0.0
  %1184 = vmatprep.subr.mxu0 0.0
  %1185 = vmatpush1.msra.mxu0 0.0
  %1186 = vmatprep.subr.mxu0 0.0
  %1187 = vmatpush1.msra.mxu0 0.0
  %1188 = vmatprep.subr.mxu0 0.0
  %1189 = vmatpush1.msra.mxu0 0.0
  %1190 = vmatprep.subr.mxu0 0.0
  %1191 = vmatpush1.msra.mxu0 0.0
  %1192 = vmatprep.subr.mxu0 0.0
  %1193 = vmatpush1.msra.mxu0 0.0
  %1194 = vmatprep.subr.mxu0 0.0
  %1195 = vmatpush1.msra.mxu0 0.0
  %1196 = vmatprep.subr.mxu0 0.0
  %1197 = vmatpush1.msra.mxu0 0.0
  %1198 = vmatprep.subr.mxu0 0.0
  %1199 = vmatpush1.msra.mxu0 0.0
  %1200 = vmatprep.mubr.f32.mxu0 0.0
  %v1201 = vand.u32 %v237, 4294901760
  %v1202 = vsub.f32 %v237, %v1201
  %1203 = vmatmul.mubr.f32.gmra.mrb[0].mxu0 %v1202
  %v1204 = vpop.f32.mrb[0].mxu0
  %v1205 = vadd.f32 %v1103, %v1204
  %v1206 = vpop.f32.mrb[0].mxu0
  %1207 = vmatprep.mubr.f32.mxu0 0.0
  %v1208 = vand.u32 %v240, 4294901760
  %v1209 = vsub.f32 %v240, %v1208
  %1210 = vmatmul.mubr.f32.gmra.mrb[0].mxu0 %v1209
  %v1211 = vpop.f32.mrb[0].mxu0
  %v1212 = vadd.f32 %v1109, %v1211
  %v1213 = vpop.f32.mrb[0].mxu0
  %1214 = vmatprep.mubr.f32.mxu0 0.0
  %v1215 = vand.u32 %v243, 4294901760
  %v1216 = vsub.f32 %v243, %v1215
  %1217 = vmatmul.mubr.f32.gmra.mrb[0].mxu0 %v1216
  %v1218 = vpop.f32.mrb[0].mxu0
  %v1219 = vadd.f32 %v1115, %v1218
  %v1220 = vpop.f32.mrb[0].mxu0
  %1221 = vmatprep.mubr.f32.mxu0 0.0
  %v1222 = vand.u32 %v246, 4294901760
  %v1223 = vsub.f32 %v246, %v1222
  %1224 = vmatmul.mubr.f32.gmra.mrb[0].mxu0 %v1223
  %v1225 = vpop.f32.mrb[0].mxu0
  %v1226 = vadd.f32 %v1121, %v1225
  %v1227 = vpop.f32.mrb[0].mxu0
  %1228 = vdwg.mxu0
  %1229 = vmatprep.subr.mxu0 0.0
  %v1230 = vand.u32 %v195, 4294901760
  %1231 = vmatpush1.msra.mxu0 %v1230
  %1232 = vmatprep.subr.mxu0 0.0
  %v1233 = vand.u32 %v196, 4294901760
  %1234 = vmatpush1.msra.mxu0 %v1233
  %1235 = vmatprep.subr.mxu0 0.0
  %v1236 = vand.u32 %v197, 4294901760
  %1237 = vmatpush1.msra.mxu0 %v1236
  %1238 = vmatprep.subr.mxu0 0.0
  %v1239 = vand.u32 %v198, 4294901760
  %1240 = vmatpush1.msra.mxu0 %v1239
  %1241 = vmatprep.subr.mxu0 0.0
  %v1242 = vand.u32 %v199, 4294901760
  %1243 = vmatpush1.msra.mxu0 %v1242
  %1244 = vmatprep.subr.mxu0 0.0
  %v1245 = vand.u32 %v892, 4294901760
  %1246 = vmatpush1.msra.mxu0 %v1245
  %1247 = vmatprep.subr.mxu0 0.0
  %1248 = vmatpush1.msra.mxu0 0.0
  %1249 = vmatprep.subr.mxu0 0.0
  %1250 = vmatpush1.msra.mxu0 0.0
  %1251 = vmatprep.subr.mxu0 0.0
  %1252 = vmatpush1.msra.mxu0 0.0
  %1253 = vmatprep.subr.mxu0 0.0
  %1254 = vmatpush1.msra.mxu0 0.0
  %1255 = vmatprep.subr.mxu0 0.0
  %1256 = vmatpush1.msra.mxu0 0.0
  %1257 = vmatprep.subr.mxu0 0.0
  %1258 = vmatpush1.msra.mxu0 0.0
  %1259 = vmatprep.subr.mxu0 0.0
  %1260 = vmatpush1.msra.mxu0 0.0
  %1261 = vmatprep.subr.mxu0 0.0
  %1262 = vmatpush1.msra.mxu0 0.0
  %1263 = vmatprep.subr.mxu0 0.0
  %1264 = vmatpush1.msra.mxu0 0.0
  %1265 = vmatprep.subr.mxu0 0.0
  %1266 = vmatpush1.msra.mxu0 0.0
  %1267 = vmatprep.subr.mxu0 0.0
  %1268 = vmatpush1.msra.mxu0 0.0
  %1269 = vmatprep.subr.mxu0 0.0
  %1270 = vmatpush1.msra.mxu0 0.0
  %1271 = vmatprep.subr.mxu0 0.0
  %1272 = vmatpush1.msra.mxu0 0.0
  %1273 = vmatprep.subr.mxu0 0.0
  %1274 = vmatpush1.msra.mxu0 0.0
  %1275 = vmatprep.subr.mxu0 0.0
  %1276 = vmatpush1.msra.mxu0 0.0
  %1277 = vmatprep.subr.mxu0 0.0
  %1278 = vmatpush1.msra.mxu0 0.0
  %1279 = vmatprep.subr.mxu0 0.0
  %1280 = vmatpush1.msra.mxu0 0.0
  %1281 = vmatprep.subr.mxu0 0.0
  %1282 = vmatpush1.msra.mxu0 0.0
  %1283 = vmatprep.subr.mxu0 0.0
  %1284 = vmatpush1.msra.mxu0 0.0
  %1285 = vmatprep.subr.mxu0 0.0
  %1286 = vmatpush1.msra.mxu0 0.0
  %1287 = vmatprep.subr.mxu0 0.0
  %1288 = vmatpush1.msra.mxu0 0.0
  %1289 = vmatprep.subr.mxu0 0.0
  %1290 = vmatpush1.msra.mxu0 0.0
  %1291 = vmatprep.subr.mxu0 0.0
  %1292 = vmatpush1.msra.mxu0 0.0
  %1293 = vmatprep.subr.mxu0 0.0
  %1294 = vmatpush1.msra.mxu0 0.0
  %1295 = vmatprep.subr.mxu0 0.0
  %1296 = vmatpush1.msra.mxu0 0.0
  %1297 = vmatprep.subr.mxu0 0.0
  %1298 = vmatpush1.msra.mxu0 0.0
  %1299 = vmatprep.mubr.f32.mxu0 0.0
  %v1300 = vand.u32 %v237, 4294901760
  %v1301 = vsub.f32 %v237, %v1300
  %v1302 = vand.u32 %v1301, 4294901760
  %1303 = vmatmul.mubr.f32.gmra.mrb[0].mxu0 %v1302
  %v1304 = vpop.f32.mrb[0].mxu0
  %v1305 = vadd.f32 %v1205, %v1304
  %v1306 = vpop.f32.mrb[0].mxu0
  %1307 = vmatprep.mubr.f32.mxu0 0.0
  %v1308 = vand.u32 %v240, 4294901760
  %v1309 = vsub.f32 %v240, %v1308
  %v1310 = vand.u32 %v1309, 4294901760
  %1311 = vmatmul.mubr.f32.gmra.mrb[0].mxu0 %v1310
  %v1312 = vpop.f32.mrb[0].mxu0
  %v1313 = vadd.f32 %v1212, %v1312
  %v1314 = vpop.f32.mrb[0].mxu0
  %1315 = vmatprep.mubr.f32.mxu0 0.0
  %v1316 = vand.u32 %v243, 4294901760
  %v1317 = vsub.f32 %v243, %v1316
  %v1318 = vand.u32 %v1317, 4294901760
  %1319 = vmatmul.mubr.f32.gmra.mrb[0].mxu0 %v1318
  %v1320 = vpop.f32.mrb[0].mxu0
  %v1321 = vadd.f32 %v1219, %v1320
  %v1322 = vpop.f32.mrb[0].mxu0
  %1323 = vmatprep.mubr.f32.mxu0 0.0
  %v1324 = vand.u32 %v246, 4294901760
  %v1325 = vsub.f32 %v246, %v1324
  %v1326 = vand.u32 %v1325, 4294901760
  %1327 = vmatmul.mubr.f32.gmra.mrb[0].mxu0 %v1326
  %v1328 = vpop.f32.mrb[0].mxu0
  %v1329 = vadd.f32 %v1226, %v1328
  %v1330 = vpop.f32.mrb[0].mxu0
  %1331 = vdwg.mxu0
  %1332 = vmatprep.subr.mxu0 0.0
  %v1333 = vand.u32 %v195, 4294901760
  %v1334 = vsub.f32 %v195, %v1333
  %v1335 = vand.u32 %v1334, 4294901760
  %1336 = vmatpush1.msra.mxu0 %v1335
  %1337 = vmatprep.subr.mxu0 0.0
  %v1338 = vand.u32 %v196, 4294901760
  %v1339 = vsub.f32 %v196, %v1338
  %v1340 = vand.u32 %v1339, 4294901760
  %1341 = vmatpush1.msra.mxu0 %v1340
  %1342 = vmatprep.subr.mxu0 0.0
  %v1343 = vand.u32 %v197, 4294901760
  %v1344 = vsub.f32 %v197, %v1343
  %v1345 = vand.u32 %v1344, 4294901760
  %1346 = vmatpush1.msra.mxu0 %v1345
  %1347 = vmatprep.subr.mxu0 0.0
  %v1348 = vand.u32 %v198, 4294901760
  %v1349 = vsub.f32 %v198, %v1348
  %v1350 = vand.u32 %v1349, 4294901760
  %1351 = vmatpush1.msra.mxu0 %v1350
  %1352 = vmatprep.subr.mxu0 0.0
  %v1353 = vand.u32 %v199, 4294901760
  %v1354 = vsub.f32 %v199, %v1353
  %v1355 = vand.u32 %v1354, 4294901760
  %1356 = vmatpush1.msra.mxu0 %v1355
  %1357 = vmatprep.subr.mxu0 0.0
  %v1358 = vand.u32 %v892, 4294901760
  %v1359 = vsub.f32 %v892, %v1358
  %v1360 = vand.u32 %v1359, 4294901760
  %1361 = vmatpush1.msra.mxu0 %v1360
  %1362 = vmatprep.subr.mxu0 0.0
  %1363 = vmatpush1.msra.mxu0 0.0
  %1364 = vmatprep.subr.mxu0 0.0
  %1365 = vmatpush1.msra.mxu0 0.0
  %1366 = vmatprep.subr.mxu0 0.0
  %1367 = vmatpush1.msra.mxu0 0.0
  %1368 = vmatprep.subr.mxu0 0.0
  %1369 = vmatpush1.msra.mxu0 0.0
  %1370 = vmatprep.subr.mxu0 0.0
  %1371 = vmatpush1.msra.mxu0 0.0
  %1372 = vmatprep.subr.mxu0 0.0
  %1373 = vmatpush1.msra.mxu0 0.0
  %1374 = vmatprep.subr.mxu0 0.0
  %1375 = vmatpush1.msra.mxu0 0.0
  %1376 = vmatprep.subr.mxu0 0.0
  %1377 = vmatpush1.msra.mxu0 0.0
  %1378 = vmatprep.subr.mxu0 0.0
  %1379 = vmatpush1.msra.mxu0 0.0
  %1380 = vmatprep.subr.mxu0 0.0
  %1381 = vmatpush1.msra.mxu0 0.0
  %1382 = vmatprep.subr.mxu0 0.0
  %1383 = vmatpush1.msra.mxu0 0.0
  %1384 = vmatprep.subr.mxu0 0.0
  %1385 = vmatpush1.msra.mxu0 0.0
  %1386 = vmatprep.subr.mxu0 0.0
  %1387 = vmatpush1.msra.mxu0 0.0
  %1388 = vmatprep.subr.mxu0 0.0
  %1389 = vmatpush1.msra.mxu0 0.0
  %1390 = vmatprep.subr.mxu0 0.0
  %1391 = vmatpush1.msra.mxu0 0.0
  %1392 = vmatprep.subr.mxu0 0.0
  %1393 = vmatpush1.msra.mxu0 0.0
  %1394 = vmatprep.subr.mxu0 0.0
  %1395 = vmatpush1.msra.mxu0 0.0
  %1396 = vmatprep.subr.mxu0 0.0
  %1397 = vmatpush1.msra.mxu0 0.0
  %1398 = vmatprep.subr.mxu0 0.0
  %1399 = vmatpush1.msra.mxu0 0.0
  %1400 = vmatprep.subr.mxu0 0.0
  %1401 = vmatpush1.msra.mxu0 0.0
  %1402 = vmatprep.subr.mxu0 0.0
  %1403 = vmatpush1.msra.mxu0 0.0
  %1404 = vmatprep.subr.mxu0 0.0
  %1405 = vmatpush1.msra.mxu0 0.0
  %1406 = vmatprep.subr.mxu0 0.0
  %1407 = vmatpush1.msra.mxu0 0.0
  %1408 = vmatprep.subr.mxu0 0.0
  %1409 = vmatpush1.msra.mxu0 0.0
  %1410 = vmatprep.subr.mxu0 0.0
  %1411 = vmatpush1.msra.mxu0 0.0
  %1412 = vmatprep.subr.mxu0 0.0
  %1413 = vmatpush1.msra.mxu0 0.0
  %1414 = vmatprep.mubr.f32.mxu0 0.0
  %v1415 = vand.u32 %v237, 4294901760
  %1416 = vmatmul.mubr.f32.gmra.mrb[0].mxu0 %v1415
  %v1417 = vpop.f32.mrb[0].mxu0
  %v1418 = vadd.f32 %v1305, %v1417
  %v1419 = vpop.f32.mrb[0].mxu0
  %1420 = vmatprep.mubr.f32.mxu0 0.0
  %v1421 = vand.u32 %v240, 4294901760
  %1422 = vmatmul.mubr.f32.gmra.mrb[0].mxu0 %v1421
  %v1423 = vpop.f32.mrb[0].mxu0
  %v1424 = vadd.f32 %v1313, %v1423
  %v1425 = vpop.f32.mrb[0].mxu0
  %1426 = vmatprep.mubr.f32.mxu0 0.0
  %v1427 = vand.u32 %v243, 4294901760
  %1428 = vmatmul.mubr.f32.gmra.mrb[0].mxu0 %v1427
  %v1429 = vpop.f32.mrb[0].mxu0
  %v1430 = vadd.f32 %v1321, %v1429
  %v1431 = vpop.f32.mrb[0].mxu0
  %1432 = vmatprep.mubr.f32.mxu0 0.0
  %v1433 = vand.u32 %v246, 4294901760
  %1434 = vmatmul.mubr.f32.gmra.mrb[0].mxu0 %v1433
  %v1435 = vpop.f32.mrb[0].mxu0
  %v1436 = vadd.f32 %v1329, %v1435
  %v1437 = vpop.f32.mrb[0].mxu0
  %1438 = vdwg.mxu0
  %1439 = vmatprep.subr.mxu0 0.0
  %v1440 = vand.u32 %v195, 4294901760
  %1441 = vmatpush1.msra.mxu0 %v1440
  %1442 = vmatprep.subr.mxu0 0.0
  %v1443 = vand.u32 %v196, 4294901760
  %1444 = vmatpush1.msra.mxu0 %v1443
  %1445 = vmatprep.subr.mxu0 0.0
  %v1446 = vand.u32 %v197, 4294901760
  %1447 = vmatpush1.msra.mxu0 %v1446
  %1448 = vmatprep.subr.mxu0 0.0
  %v1449 = vand.u32 %v198, 4294901760
  %1450 = vmatpush1.msra.mxu0 %v1449
  %1451 = vmatprep.subr.mxu0 0.0
  %v1452 = vand.u32 %v199, 4294901760
  %1453 = vmatpush1.msra.mxu0 %v1452
  %1454 = vmatprep.subr.mxu0 0.0
  %v1455 = vand.u32 %v892, 4294901760
  %1456 = vmatpush1.msra.mxu0 %v1455
  %1457 = vmatprep.subr.mxu0 0.0
  %1458 = vmatpush1.msra.mxu0 0.0
  %1459 = vmatprep.subr.mxu0 0.0
  %1460 = vmatpush1.msra.mxu0 0.0
  %1461 = vmatprep.subr.mxu0 0.0
  %1462 = vmatpush1.msra.mxu0 0.0
  %1463 = vmatprep.subr.mxu0 0.0
  %1464 = vmatpush1.msra.mxu0 0.0
  %1465 = vmatprep.subr.mxu0 0.0
  %1466 = vmatpush1.msra.mxu0 0.0
  %1467 = vmatprep.subr.mxu0 0.0
  %1468 = vmatpush1.msra.mxu0 0.0
  %1469 = vmatprep.subr.mxu0 0.0
  %1470 = vmatpush1.msra.mxu0 0.0
  %1471 = vmatprep.subr.mxu0 0.0
  %1472 = vmatpush1.msra.mxu0 0.0
  %1473 = vmatprep.subr.mxu0 0.0
  %1474 = vmatpush1.msra.mxu0 0.0
  %1475 = vmatprep.subr.mxu0 0.0
  %1476 = vmatpush1.msra.mxu0 0.0
  %1477 = vmatprep.subr.mxu0 0.0
  %1478 = vmatpush1.msra.mxu0 0.0
  %1479 = vmatprep.subr.mxu0 0.0
  %1480 = vmatpush1.msra.mxu0 0.0
  %1481 = vmatprep.subr.mxu0 0.0
  %1482 = vmatpush1.msra.mxu0 0.0
  %1483 = vmatprep.subr.mxu0 0.0
  %1484 = vmatpush1.msra.mxu0 0.0
  %1485 = vmatprep.subr.mxu0 0.0
  %1486 = vmatpush1.msra.mxu0 0.0
  %1487 = vmatprep.subr.mxu0 0.0
  %1488 = vmatpush1.msra.mxu0 0.0
  %1489 = vmatprep.subr.mxu0 0.0
  %1490 = vmatpush1.msra.mxu0 0.0
  %1491 = vmatprep.subr.mxu0 0.0
  %1492 = vmatpush1.msra.mxu0 0.0
  %1493 = vmatprep.subr.mxu0 0.0
  %1494 = vmatpush1.msra.mxu0 0.0
  %1495 = vmatprep.subr.mxu0 0.0
  %1496 = vmatpush1.msra.mxu0 0.0
  %1497 = vmatprep.subr.mxu0 0.0
  %1498 = vmatpush1.msra.mxu0 0.0
  %1499 = vmatprep.subr.mxu0 0.0
  %1500 = vmatpush1.msra.mxu0 0.0
  %1501 = vmatprep.subr.mxu0 0.0
  %1502 = vmatpush1.msra.mxu0 0.0
  %1503 = vmatprep.subr.mxu0 0.0
  %1504 = vmatpush1.msra.mxu0 0.0
  %1505 = vmatprep.subr.mxu0 0.0
  %1506 = vmatpush1.msra.mxu0 0.0
  %1507 = vmatprep.subr.mxu0 0.0
  %1508 = vmatpush1.msra.mxu0 0.0
  %1509 = vmatprep.mubr.f32.mxu0 0.0
  %v1510 = vand.u32 %v237, 4294901760
  %1511 = vmatmul.mubr.f32.gmra.mrb[0].mxu0 %v1510
  %v1512 = vpop.f32.mrb[0].mxu0
  %v1513 = vadd.f32 %v1418, %v1512
  %v1514 = vpop.f32.mrb[0].mxu0
  %1515 = vmatprep.mubr.f32.mxu0 0.0
  %v1516 = vand.u32 %v240, 4294901760
  %1517 = vmatmul.mubr.f32.gmra.mrb[0].mxu0 %v1516
  %v1518 = vpop.f32.mrb[0].mxu0
  %v1519 = vadd.f32 %v1424, %v1518
  %v1520 = vpop.f32.mrb[0].mxu0
  %1521 = vmatprep.mubr.f32.mxu0 0.0
  %v1522 = vand.u32 %v243, 4294901760
  %1523 = vmatmul.mubr.f32.gmra.mrb[0].mxu0 %v1522
  %v1524 = vpop.f32.mrb[0].mxu0
  %v1525 = vadd.f32 %v1430, %v1524
  %v1526 = vpop.f32.mrb[0].mxu0
  %1527 = vmatprep.mubr.f32.mxu0 0.0
  %v1528 = vand.u32 %v246, 4294901760
  %1529 = vmatmul.mubr.f32.gmra.mrb[0].mxu0 %v1528
  %v1530 = vpop.f32.mrb[0].mxu0
  %v1531 = vadd.f32 %v1436, %v1530
  %v1532 = vpop.f32.mrb[0].mxu0
  %1533 = vdwg.mxu0
  %v1534 = vmul.f32 %v870, 0.5
  %v1535 = vmul.f32 %v876, 0.5
  %v1536 = vmul.f32 %v882, 0.5
  %v1537 = vmul.f32 %v888, 0.5
  %v1538 = vmul.f32 %v1513, 0.5
  %v1539 = vmul.f32 %v1519, 0.5
  %v1540 = vmul.f32 %v1525, 0.5
  %v1541 = vmul.f32 %v1531, 0.5
  %v1542 = vmul.f32 %v870, 0.70710677
  %v1543 = vmul.f32 %v876, 0.70710677
  %v1544 = vmul.f32 %v882, 0.70710677
  %v1545 = vmul.f32 %v888, 0.70710677
  %v1546 = vmul.f32 %v1513, 0.70710677
  %v1547 = vmul.f32 %v1519, 0.70710677
  %v1548 = vmul.f32 %v1525, 0.70710677
  %v1549 = vmul.f32 %v1531, 0.70710677
  %v1550 = verf.f32.pop %v1542
  %v1551 = verf.f32.pop %v1543
  %v1552 = verf.f32.pop %v1544
  %v1553 = verf.f32.pop %v1545
  %v1554 = verf.f32.pop %v1546
  %v1555 = verf.f32.pop %v1547
  %v1556 = verf.f32.pop %v1548
  %v1557 = verf.f32.pop %v1549
  %v1558 = vadd.f32 %v1550, 1.0
  %v1559 = vadd.f32 %v1551, 1.0
  %v1560 = vadd.f32 %v1552, 1.0
  %v1561 = vadd.f32 %v1553, 1.0
  %v1562 = vadd.f32 %v1554, 1.0
  %v1563 = vadd.f32 %v1555, 1.0
  %v1564 = vadd.f32 %v1556, 1.0
  %v1565 = vadd.f32 %v1557, 1.0
  %v1566 = vmul.f32 %v1534, %v1558
  %v1567 = vmul.f32 %v1535, %v1559
  %v1568 = vmul.f32 %v1536, %v1560
  %v1569 = vmul.f32 %v1537, %v1561
  %v1570 = vmul.f32 %v1538, %v1562
  %v1571 = vmul.f32 %v1539, %v1563
  %v1572 = vmul.f32 %v1540, %v1564
  %v1573 = vmul.f32 %v1541, %v1565
  %v1574 = vld [vmem:[%s4] sm:$0xff]
  %v1575 = vld [vmem:[%s4 + $0x8] sm:$0xff]
  %v1576 = vld [vmem:[%s4 + $0x10] sm:$0xff]
  %v1577 = vld [vmem:[%s4 + $0x18] sm:$0xff]
  %v1578 = vld [vmem:[%s4 + $0x20] sm:$0xff]
  %v1579 = vld [vmem:[%s4 + $0x28] sm:$0x1f]
  %1581 = vset.pattern.permute.xlu0 0
  %1582 = vperm.xlu0 %1581, %v1574
  %v1583 = vpop.permute.xlu0 %1582
  %1586 = vset.pattern.permute.xlu0 0
  %1587 = vperm.xlu0 %1586, %v1575
  %v1588 = vpop.permute.xlu0 %1587
  %1591 = vset.pattern.permute.xlu0 0
  %1592 = vperm.xlu0 %1591, %v1576
  %v1593 = vpop.permute.xlu0 %1592
  %1596 = vset.pattern.permute.xlu0 0
  %1597 = vperm.xlu0 %1596, %v1577
  %v1598 = vpop.permute.xlu0 %1597
  %1601 = vset.pattern.permute.xlu0 0
  %1602 = vperm.xlu0 %1601, %v1578
  %v1603 = vpop.permute.xlu0 %1602
  %1606 = vset.pattern.permute.xlu0 0
  %1607 = vperm.xlu0 %1606, %v1579
  %v1608 = vpop.permute.xlu0 %1607
  %vm1610 = vcmask 261120
  %v1612 = vsel %vm1610, %v205, 0
  %v1615 = vsel %vm1610, %v206, 0
  %v1618 = vsel %vm1610, %v207, 0
  %v1621 = vsel %vm1610, %v208, 0
  %v1624 = vsel %vm1610, %v209, 0
  %v1627 = vsel %vm1610, %v210, 0
  %1629 = vmatprep.subr.mxu0 0.0
  %v1630 = vand.u32 %v1566, 4294901760
  %1631 = vmatpush1.msra.mxu0 %v1630
  %1632 = vmatprep.subr.mxu0 0.0
  %v1633 = vand.u32 %v1567, 4294901760
  %1634 = vmatpush1.msra.mxu0 %v1633
  %1635 = vmatprep.subr.mxu0 0.0
  %v1636 = vand.u32 %v1568, 4294901760
  %1637 = vmatpush1.msra.mxu0 %v1636
  %1638 = vmatprep.subr.mxu0 0.0
  %v1639 = vand.u32 %v1569, 4294901760
  %1640 = vmatpush1.msra.mxu0 %v1639
  %1641 = vmatprep.subr.mxu0 0.0
  %1642 = vmatpush1.msra.mxu0 0.0
  %1643 = vmatprep.subr.mxu0 0.0
  %1644 = vmatpush1.msra.mxu0 0.0
  %1645 = vmatprep.subr.mxu0 0.0
  %1646 = vmatpush1.msra.mxu0 0.0
  %1647 = vmatprep.subr.mxu0 0.0
  %1648 = vmatpush1.msra.mxu0 0.0
  %1649 = vmatprep.subr.mxu0 0.0
  %1650 = vmatpush1.msra.mxu0 0.0
  %1651 = vmatprep.subr.mxu0 0.0
  %1652 = vmatpush1.msra.mxu0 0.0
  %1653 = vmatprep.subr.mxu0 0.0
  %1654 = vmatpush1.msra.mxu0 0.0
  %1655 = vmatprep.subr.mxu0 0.0
  %1656 = vmatpush1.msra.mxu0 0.0
  %1657 = vmatprep.subr.mxu0 0.0
  %1658 = vmatpush1.msra.mxu0 0.0
  %1659 = vmatprep.subr.mxu0 0.0
  %1660 = vmatpush1.msra.mxu0 0.0
  %1661 = vmatprep.subr.mxu0 0.0
  %1662 = vmatpush1.msra.mxu0 0.0
  %1663 = vmatprep.subr.mxu0 0.0
  %1664 = vmatpush1.msra.mxu0 0.0
  %1665 = vmatprep.subr.mxu0 0.0
  %1666 = vmatpush1.msra.mxu0 0.0
  %1667 = vmatprep.subr.mxu0 0.0
  %1668 = vmatpush1.msra.mxu0 0.0
  %1669 = vmatprep.subr.mxu0 0.0
  %1670 = vmatpush1.msra.mxu0 0.0
  %1671 = vmatprep.subr.mxu0 0.0
  %1672 = vmatpush1.msra.mxu0 0.0
  %1673 = vmatprep.subr.mxu0 0.0
  %1674 = vmatpush1.msra.mxu0 0.0
  %1675 = vmatprep.subr.mxu0 0.0
  %1676 = vmatpush1.msra.mxu0 0.0
  %1677 = vmatprep.subr.mxu0 0.0
  %1678 = vmatpush1.msra.mxu0 0.0
  %1679 = vmatprep.subr.mxu0 0.0
  %1680 = vmatpush1.msra.mxu0 0.0
  %1681 = vmatprep.subr.mxu0 0.0
  %1682 = vmatpush1.msra.mxu0 0.0
  %1683 = vmatprep.subr.mxu0 0.0
  %1684 = vmatpush1.msra.mxu0 0.0
  %1685 = vmatprep.subr.mxu0 0.0
  %1686 = vmatpush1.msra.mxu0 0.0
  %1687 = vmatprep.subr.mxu0 0.0
  %1688 = vmatpush1.msra.mxu0 0.0
  %1689 = vmatprep.subr.mxu0 0.0
  %1690 = vmatpush1.msra.mxu0 0.0
  %1691 = vmatprep.subr.mxu0 0.0
  %1692 = vmatpush1.msra.mxu0 0.0
  %1693 = vmatprep.subr.mxu0 0.0
  %1694 = vmatpush1.msra.mxu0 0.0
  %1695 = vmatprep.subr.mxu0 0.0
  %1696 = vmatpush1.msra.mxu0 0.0
  %1697 = vmatprep.mubr.f32.mxu0 0.0
  %v1698 = vand.u32 %v1612, 4294901760
  %v1699 = vsub.f32 %v1612, %v1698
  %v1700 = vand.u32 %v1699, 4294901760
  %v1701 = vsub.f32 %v1699, %v1700
  %v1702 = vand.u32 %v1701, 4294901760
  %1703 = vmatmul.mubr.f32.gmra.mrb[0].mxu0 %v1702
  %v1704 = vpop.f32.mrb[0].mxu0
  %v1705 = vadd.f32 %v1583, %v1704
  %v1706 = vpop.f32.mrb[0].mxu0
  %1707 = vmatprep.mubr.f32.mxu0 0.0
  %v1708 = vand.u32 %v1615, 4294901760
  %v1709 = vsub.f32 %v1615, %v1708
  %v1710 = vand.u32 %v1709, 4294901760
  %v1711 = vsub.f32 %v1709, %v1710
  %v1712 = vand.u32 %v1711, 4294901760
  %1713 = vmatmul.mubr.f32.gmra.mrb[0].mxu0 %v1712
  %v1714 = vpop.f32.mrb[0].mxu0
  %v1715 = vadd.f32 %v1588, %v1714
  %v1716 = vpop.f32.mrb[0].mxu0
  %1717 = vmatprep.mubr.f32.mxu0 0.0
  %v1718 = vand.u32 %v1618, 4294901760
  %v1719 = vsub.f32 %v1618, %v1718
  %v1720 = vand.u32 %v1719, 4294901760
  %v1721 = vsub.f32 %v1719, %v1720
  %v1722 = vand.u32 %v1721, 4294901760
  %1723 = vmatmul.mubr.f32.gmra.mrb[0].mxu0 %v1722
  %v1724 = vpop.f32.mrb[0].mxu0
  %v1725 = vadd.f32 %v1593, %v1724
  %v1726 = vpop.f32.mrb[0].mxu0
  %1727 = vmatprep.mubr.f32.mxu0 0.0
  %v1728 = vand.u32 %v1621, 4294901760
  %v1729 = vsub.f32 %v1621, %v1728
  %v1730 = vand.u32 %v1729, 4294901760
  %v1731 = vsub.f32 %v1729, %v1730
  %v1732 = vand.u32 %v1731, 4294901760
  %1733 = vmatmul.mubr.f32.gmra.mrb[0].mxu0 %v1732
  %v1734 = vpop.f32.mrb[0].mxu0
  %v1735 = vadd.f32 %v1598, %v1734
  %v1736 = vpop.f32.mrb[0].mxu0
  %1737 = vmatprep.mubr.f32.mxu0 0.0
  %v1738 = vand.u32 %v1624, 4294901760
  %v1739 = vsub.f32 %v1624, %v1738
  %v1740 = vand.u32 %v1739, 4294901760
  %v1741 = vsub.f32 %v1739, %v1740
  %v1742 = vand.u32 %v1741, 4294901760
  %1743 = vmatmul.mubr.f32.gmra.mrb[0].mxu0 %v1742
  %v1744 = vpop.f32.mrb[0].mxu0
  %v1745 = vadd.f32 %v1603, %v1744
  %v1746 = vpop.f32.mrb[0].mxu0
  %1747 = vmatprep.mubr.f32.mxu0 0.0
  %v1748 = vand.u32 %v1627, 4294901760
  %v1749 = vsub.f32 %v1627, %v1748
  %v1750 = vand.u32 %v1749, 4294901760
  %v1751 = vsub.f32 %v1749, %v1750
  %v1752 = vand.u32 %v1751, 4294901760
  %1753 = vmatmul.mubr.f32.gmra.mrb[0].mxu0 %v1752
  %v1754 = vpop.f32.mrb[0].mxu0
  %v1755 = vadd.f32 %v1608, %v1754
  %v1756 = vpop.f32.mrb[0].mxu0
  %1757 = vdwg.mxu0
  %1758 = vmatprep.subr.mxu0 0.0
  %v1759 = vand.u32 %v1566, 4294901760
  %v1760 = vsub.f32 %v1566, %v1759
  %v1761 = vand.u32 %v1760, 4294901760
  %v1762 = vsub.f32 %v1760, %v1761
  %v1763 = vand.u32 %v1762, 4294901760
  %1764 = vmatpush1.msra.mxu0 %v1763
  %1765 = vmatprep.subr.mxu0 0.0
  %v1766 = vand.u32 %v1567, 4294901760
  %v1767 = vsub.f32 %v1567, %v1766
  %v1768 = vand.u32 %v1767, 4294901760
  %v1769 = vsub.f32 %v1767, %v1768
  %v1770 = vand.u32 %v1769, 4294901760
  %1771 = vmatpush1.msra.mxu0 %v1770
  %1772 = vmatprep.subr.mxu0 0.0
  %v1773 = vand.u32 %v1568, 4294901760
  %v1774 = vsub.f32 %v1568, %v1773
  %v1775 = vand.u32 %v1774, 4294901760
  %v1776 = vsub.f32 %v1774, %v1775
  %v1777 = vand.u32 %v1776, 4294901760
  %1778 = vmatpush1.msra.mxu0 %v1777
  %1779 = vmatprep.subr.mxu0 0.0
  %v1780 = vand.u32 %v1569, 4294901760
  %v1781 = vsub.f32 %v1569, %v1780
  %v1782 = vand.u32 %v1781, 4294901760
  %v1783 = vsub.f32 %v1781, %v1782
  %v1784 = vand.u32 %v1783, 4294901760
  %1785 = vmatpush1.msra.mxu0 %v1784
  %1786 = vmatprep.subr.mxu0 0.0
  %1787 = vmatpush1.msra.mxu0 0.0
  %1788 = vmatprep.subr.mxu0 0.0
  %1789 = vmatpush1.msra.mxu0 0.0
  %1790 = vmatprep.subr.mxu0 0.0
  %1791 = vmatpush1.msra.mxu0 0.0
  %1792 = vmatprep.subr.mxu0 0.0
  %1793 = vmatpush1.msra.mxu0 0.0
  %1794 = vmatprep.subr.mxu0 0.0
  %1795 = vmatpush1.msra.mxu0 0.0
  %1796 = vmatprep.subr.mxu0 0.0
  %1797 = vmatpush1.msra.mxu0 0.0
  %1798 = vmatprep.subr.mxu0 0.0
  %1799 = vmatpush1.msra.mxu0 0.0
  %1800 = vmatprep.subr.mxu0 0.0
  %1801 = vmatpush1.msra.mxu0 0.0
  %1802 = vmatprep.subr.mxu0 0.0
  %1803 = vmatpush1.msra.mxu0 0.0
  %1804 = vmatprep.subr.mxu0 0.0
  %1805 = vmatpush1.msra.mxu0 0.0
  %1806 = vmatprep.subr.mxu0 0.0
  %1807 = vmatpush1.msra.mxu0 0.0
  %1808 = vmatprep.subr.mxu0 0.0
  %1809 = vmatpush1.msra.mxu0 0.0
  %1810 = vmatprep.subr.mxu0 0.0
  %1811 = vmatpush1.msra.mxu0 0.0
  %1812 = vmatprep.subr.mxu0 0.0
  %1813 = vmatpush1.msra.mxu0 0.0
  %1814 = vmatprep.subr.mxu0 0.0
  %1815 = vmatpush1.msra.mxu0 0.0
  %1816 = vmatprep.subr.mxu0 0.0
  %1817 = vmatpush1.msra.mxu0 0.0
  %1818 = vmatprep.subr.mxu0 0.0
  %1819 = vmatpush1.msra.mxu0 0.0
  %1820 = vmatprep.subr.mxu0 0.0
  %1821 = vmatpush1.msra.mxu0 0.0
  %1822 = vmatprep.subr.mxu0 0.0
  %1823 = vmatpush1.msra.mxu0 0.0
  %1824 = vmatprep.subr.mxu0 0.0
  %1825 = vmatpush1.msra.mxu0 0.0
  %1826 = vmatprep.subr.mxu0 0.0
  %1827 = vmatpush1.msra.mxu0 0.0
  %1828 = vmatprep.subr.mxu0 0.0
  %1829 = vmatpush1.msra.mxu0 0.0
  %1830 = vmatprep.subr.mxu0 0.0
  %1831 = vmatpush1.msra.mxu0 0.0
  %1832 = vmatprep.subr.mxu0 0.0
  %1833 = vmatpush1.msra.mxu0 0.0
  %1834 = vmatprep.subr.mxu0 0.0
  %1835 = vmatpush1.msra.mxu0 0.0
  %1836 = vmatprep.subr.mxu0 0.0
  %1837 = vmatpush1.msra.mxu0 0.0
  %1838 = vmatprep.subr.mxu0 0.0
  %1839 = vmatpush1.msra.mxu0 0.0
  %1840 = vmatprep.subr.mxu0 0.0
  %1841 = vmatpush1.msra.mxu0 0.0
  %1842 = vmatprep.mubr.f32.mxu0 0.0
  %v1843 = vand.u32 %v1612, 4294901760
  %1844 = vmatmul.mubr.f32.gmra.mrb[0].mxu0 %v1843
  %v1845 = vpop.f32.mrb[0].mxu0
  %v1846 = vadd.f32 %v1705, %v1845
  %v1847 = vpop.f32.mrb[0].mxu0
  %1848 = vmatprep.mubr.f32.mxu0 0.0
  %v1849 = vand.u32 %v1615, 4294901760
  %1850 = vmatmul.mubr.f32.gmra.mrb[0].mxu0 %v1849
  %v1851 = vpop.f32.mrb[0].mxu0
  %v1852 = vadd.f32 %v1715, %v1851
  %v1853 = vpop.f32.mrb[0].mxu0
  %1854 = vmatprep.mubr.f32.mxu0 0.0
  %v1855 = vand.u32 %v1618, 4294901760
  %1856 = vmatmul.mubr.f32.gmra.mrb[0].mxu0 %v1855
  %v1857 = vpop.f32.mrb[0].mxu0
  %v1858 = vadd.f32 %v1725, %v1857
  %v1859 = vpop.f32.mrb[0].mxu0
  %1860 = vmatprep.mubr.f32.mxu0 0.0
  %v1861 = vand.u32 %v1621, 4294901760
  %1862 = vmatmul.mubr.f32.gmra.mrb[0].mxu0 %v1861
  %v1863 = vpop.f32.mrb[0].mxu0
  %v1864 = vadd.f32 %v1735, %v1863
  %v1865 = vpop.f32.mrb[0].mxu0
  %1866 = vmatprep.mubr.f32.mxu0 0.0
  %v1867 = vand.u32 %v1624, 4294901760
  %1868 = vmatmul.mubr.f32.gmra.mrb[0].mxu0 %v1867
  %v1869 = vpop.f32.mrb[0].mxu0
  %v1870 = vadd.f32 %v1745, %v1869
  %v1871 = vpop.f32.mrb[0].mxu0
  %1872 = vmatprep.mubr.f32.mxu0 0.0
  %v1873 = vand.u32 %v1627, 4294901760
  %1874 = vmatmul.mubr.f32.gmra.mrb[0].mxu0 %v1873
  %v1875 = vpop.f32.mrb[0].mxu0
  %v1876 = vadd.f32 %v1755, %v1875
  %v1877 = vpop.f32.mrb[0].mxu0
  %1878 = vdwg.mxu0
  %1879 = vmatprep.subr.mxu0 0.0
  %v1880 = vand.u32 %v1566, 4294901760
  %v1881 = vsub.f32 %v1566, %v1880
  %1882 = vmatpush1.msra.mxu0 %v1881
  %1883 = vmatprep.subr.mxu0 0.0
  %v1884 = vand.u32 %v1567, 4294901760
  %v1885 = vsub.f32 %v1567, %v1884
  %1886 = vmatpush1.msra.mxu0 %v1885
  %1887 = vmatprep.subr.mxu0 0.0
  %v1888 = vand.u32 %v1568, 4294901760
  %v1889 = vsub.f32 %v1568, %v1888
  %1890 = vmatpush1.msra.mxu0 %v1889
  %1891 = vmatprep.subr.mxu0 0.0
  %v1892 = vand.u32 %v1569, 4294901760
  %v1893 = vsub.f32 %v1569, %v1892
  %1894 = vmatpush1.msra.mxu0 %v1893
  %1895 = vmatprep.subr.mxu0 0.0
  %1896 = vmatpush1.msra.mxu0 0.0
  %1897 = vmatprep.subr.mxu0 0.0
  %1898 = vmatpush1.msra.mxu0 0.0
  %1899 = vmatprep.subr.mxu0 0.0
  %1900 = vmatpush1.msra.mxu0 0.0
  %1901 = vmatprep.subr.mxu0 0.0
  %1902 = vmatpush1.msra.mxu0 0.0
  %1903 = vmatprep.subr.mxu0 0.0
  %1904 = vmatpush1.msra.mxu0 0.0
  %1905 = vmatprep.subr.mxu0 0.0
  %1906 = vmatpush1.msra.mxu0 0.0
  %1907 = vmatprep.subr.mxu0 0.0
  %1908 = vmatpush1.msra.mxu0 0.0
  %1909 = vmatprep.subr.mxu0 0.0
  %1910 = vmatpush1.msra.mxu0 0.0
  %1911 = vmatprep.subr.mxu0 0.0
  %1912 = vmatpush1.msra.mxu0 0.0
  %1913 = vmatprep.subr.mxu0 0.0
  %1914 = vmatpush1.msra.mxu0 0.0
  %1915 = vmatprep.subr.mxu0 0.0
  %1916 = vmatpush1.msra.mxu0 0.0
  %1917 = vmatprep.subr.mxu0 0.0
  %1918 = vmatpush1.msra.mxu0 0.0
  %1919 = vmatprep.subr.mxu0 0.0
  %1920 = vmatpush1.msra.mxu0 0.0
  %1921 = vmatprep.subr.mxu0 0.0
  %1922 = vmatpush1.msra.mxu0 0.0
  %1923 = vmatprep.subr.mxu0 0.0
  %1924 = vmatpush1.msra.mxu0 0.0
  %1925 = vmatprep.subr.mxu0 0.0
  %1926 = vmatpush1.msra.mxu0 0.0
  %1927 = vmatprep.subr.mxu0 0.0
  %1928 = vmatpush1.msra.mxu0 0.0
  %1929 = vmatprep.subr.mxu0 0.0
  %1930 = vmatpush1.msra.mxu0 0.0
  %1931 = vmatprep.subr.mxu0 0.0
  %1932 = vmatpush1.msra.mxu0 0.0
  %1933 = vmatprep.subr.mxu0 0.0
  %1934 = vmatpush1.msra.mxu0 0.0
  %1935 = vmatprep.subr.mxu0 0.0
  %1936 = vmatpush1.msra.mxu0 0.0
  %1937 = vmatprep.subr.mxu0 0.0
  %1938 = vmatpush1.msra.mxu0 0.0
  %1939 = vmatprep.subr.mxu0 0.0
  %1940 = vmatpush1.msra.mxu0 0.0
  %1941 = vmatprep.subr.mxu0 0.0
  %1942 = vmatpush1.msra.mxu0 0.0
  %1943 = vmatprep.subr.mxu0 0.0
  %1944 = vmatpush1.msra.mxu0 0.0
  %1945 = vmatprep.subr.mxu0 0.0
  %1946 = vmatpush1.msra.mxu0 0.0
  %1947 = vmatprep.subr.mxu0 0.0
  %1948 = vmatpush1.msra.mxu0 0.0
  %1949 = vmatprep.subr.mxu0 0.0
  %1950 = vmatpush1.msra.mxu0 0.0
  %1951 = vmatprep.mubr.f32.mxu0 0.0
  %v1952 = vand.u32 %v1612, 4294901760
  %v1953 = vsub.f32 %v1612, %v1952
  %1954 = vmatmul.mubr.f32.gmra.mrb[0].mxu0 %v1953
  %v1955 = vpop.f32.mrb[0].mxu0
  %v1956 = vadd.f32 %v1846, %v1955
  %v1957 = vpop.f32.mrb[0].mxu0
  %1958 = vmatprep.mubr.f32.mxu0 0.0
  %v1959 = vand.u32 %v1615, 4294901760
  %v1960 = vsub.f32 %v1615, %v1959
  %1961 = vmatmul.mubr.f32.gmra.mrb[0].mxu0 %v1960
  %v1962 = vpop.f32.mrb[0].mxu0
  %v1963 = vadd.f32 %v1852, %v1962
  %v1964 = vpop.f32.mrb[0].mxu0
  %1965 = vmatprep.mubr.f32.mxu0 0.0
  %v1966 = vand.u32 %v1618, 4294901760
  %v1967 = vsub.f32 %v1618, %v1966
  %1968 = vmatmul.mubr.f32.gmra.mrb[0].mxu0 %v1967
  %v1969 = vpop.f32.mrb[0].mxu0
  %v1970 = vadd.f32 %v1858, %v1969
  %v1971 = vpop.f32.mrb[0].mxu0
  %1972 = vmatprep.mubr.f32.mxu0 0.0
  %v1973 = vand.u32 %v1621, 4294901760
  %v1974 = vsub.f32 %v1621, %v1973
  %1975 = vmatmul.mubr.f32.gmra.mrb[0].mxu0 %v1974
  %v1976 = vpop.f32.mrb[0].mxu0
  %v1977 = vadd.f32 %v1864, %v1976
  %v1978 = vpop.f32.mrb[0].mxu0
  %1979 = vmatprep.mubr.f32.mxu0 0.0
  %v1980 = vand.u32 %v1624, 4294901760
  %v1981 = vsub.f32 %v1624, %v1980
  %1982 = vmatmul.mubr.f32.gmra.mrb[0].mxu0 %v1981
  %v1983 = vpop.f32.mrb[0].mxu0
  %v1984 = vadd.f32 %v1870, %v1983
  %v1985 = vpop.f32.mrb[0].mxu0
  %1986 = vmatprep.mubr.f32.mxu0 0.0
  %v1987 = vand.u32 %v1627, 4294901760
  %v1988 = vsub.f32 %v1627, %v1987
  %1989 = vmatmul.mubr.f32.gmra.mrb[0].mxu0 %v1988
  %v1990 = vpop.f32.mrb[0].mxu0
  %v1991 = vadd.f32 %v1876, %v1990
  %v1992 = vpop.f32.mrb[0].mxu0
  %1993 = vdwg.mxu0
  %1994 = vmatprep.subr.mxu0 0.0
  %v1995 = vand.u32 %v1566, 4294901760
  %1996 = vmatpush1.msra.mxu0 %v1995
  %1997 = vmatprep.subr.mxu0 0.0
  %v1998 = vand.u32 %v1567, 4294901760
  %1999 = vmatpush1.msra.mxu0 %v1998
  %2000 = vmatprep.subr.mxu0 0.0
  %v2001 = vand.u32 %v1568, 4294901760
  %2002 = vmatpush1.msra.mxu0 %v2001
  %2003 = vmatprep.subr.mxu0 0.0
  %v2004 = vand.u32 %v1569, 4294901760
  %2005 = vmatpush1.msra.mxu0 %v2004
  %2006 = vmatprep.subr.mxu0 0.0
  %2007 = vmatpush1.msra.mxu0 0.0
  %2008 = vmatprep.subr.mxu0 0.0
  %2009 = vmatpush1.msra.mxu0 0.0
  %2010 = vmatprep.subr.mxu0 0.0
  %2011 = vmatpush1.msra.mxu0 0.0
  %2012 = vmatprep.subr.mxu0 0.0
  %2013 = vmatpush1.msra.mxu0 0.0
  %2014 = vmatprep.subr.mxu0 0.0
  %2015 = vmatpush1.msra.mxu0 0.0
  %2016 = vmatprep.subr.mxu0 0.0
  %2017 = vmatpush1.msra.mxu0 0.0
  %2018 = vmatprep.subr.mxu0 0.0
  %2019 = vmatpush1.msra.mxu0 0.0
  %2020 = vmatprep.subr.mxu0 0.0
  %2021 = vmatpush1.msra.mxu0 0.0
  %2022 = vmatprep.subr.mxu0 0.0
  %2023 = vmatpush1.msra.mxu0 0.0
  %2024 = vmatprep.subr.mxu0 0.0
  %2025 = vmatpush1.msra.mxu0 0.0
  %2026 = vmatprep.subr.mxu0 0.0
  %2027 = vmatpush1.msra.mxu0 0.0
  %2028 = vmatprep.subr.mxu0 0.0
  %2029 = vmatpush1.msra.mxu0 0.0
  %2030 = vmatprep.subr.mxu0 0.0
  %2031 = vmatpush1.msra.mxu0 0.0
  %2032 = vmatprep.subr.mxu0 0.0
  %2033 = vmatpush1.msra.mxu0 0.0
  %2034 = vmatprep.subr.mxu0 0.0
  %2035 = vmatpush1.msra.mxu0 0.0
  %2036 = vmatprep.subr.mxu0 0.0
  %2037 = vmatpush1.msra.mxu0 0.0
  %2038 = vmatprep.subr.mxu0 0.0
  %2039 = vmatpush1.msra.mxu0 0.0
  %2040 = vmatprep.subr.mxu0 0.0
  %2041 = vmatpush1.msra.mxu0 0.0
  %2042 = vmatprep.subr.mxu0 0.0
  %2043 = vmatpush1.msra.mxu0 0.0
  %2044 = vmatprep.subr.mxu0 0.0
  %2045 = vmatpush1.msra.mxu0 0.0
  %2046 = vmatprep.subr.mxu0 0.0
  %2047 = vmatpush1.msra.mxu0 0.0
  %2048 = vmatprep.subr.mxu0 0.0
  %2049 = vmatpush1.msra.mxu0 0.0
  %2050 = vmatprep.subr.mxu0 0.0
  %2051 = vmatpush1.msra.mxu0 0.0
  %2052 = vmatprep.subr.mxu0 0.0
  %2053 = vmatpush1.msra.mxu0 0.0
  %2054 = vmatprep.subr.mxu0 0.0
  %2055 = vmatpush1.msra.mxu0 0.0
  %2056 = vmatprep.subr.mxu0 0.0
  %2057 = vmatpush1.msra.mxu0 0.0
  %2058 = vmatprep.subr.mxu0 0.0
  %2059 = vmatpush1.msra.mxu0 0.0
  %2060 = vmatprep.subr.mxu0 0.0
  %2061 = vmatpush1.msra.mxu0 0.0
  %2062 = vmatprep.mubr.f32.mxu0 0.0
  %v2063 = vand.u32 %v1612, 4294901760
  %v2064 = vsub.f32 %v1612, %v2063
  %v2065 = vand.u32 %v2064, 4294901760
  %2066 = vmatmul.mubr.f32.gmra.mrb[0].mxu0 %v2065
  %v2067 = vpop.f32.mrb[0].mxu0
  %v2068 = vadd.f32 %v1956, %v2067
  %v2069 = vpop.f32.mrb[0].mxu0
  %2070 = vmatprep.mubr.f32.mxu0 0.0
  %v2071 = vand.u32 %v1615, 4294901760
  %v2072 = vsub.f32 %v1615, %v2071
  %v2073 = vand.u32 %v2072, 4294901760
  %2074 = vmatmul.mubr.f32.gmra.mrb[0].mxu0 %v2073
  %v2075 = vpop.f32.mrb[0].mxu0
  %v2076 = vadd.f32 %v1963, %v2075
  %v2077 = vpop.f32.mrb[0].mxu0
  %2078 = vmatprep.mubr.f32.mxu0 0.0
  %v2079 = vand.u32 %v1618, 4294901760
  %v2080 = vsub.f32 %v1618, %v2079
  %v2081 = vand.u32 %v2080, 4294901760
  %2082 = vmatmul.mubr.f32.gmra.mrb[0].mxu0 %v2081
  %v2083 = vpop.f32.mrb[0].mxu0
  %v2084 = vadd.f32 %v1970, %v2083
  %v2085 = vpop.f32.mrb[0].mxu0
  %2086 = vmatprep.mubr.f32.mxu0 0.0
  %v2087 = vand.u32 %v1621, 4294901760
  %v2088 = vsub.f32 %v1621, %v2087
  %v2089 = vand.u32 %v2088, 4294901760
  %2090 = vmatmul.mubr.f32.gmra.mrb[0].mxu0 %v2089
  %v2091 = vpop.f32.mrb[0].mxu0
  %v2092 = vadd.f32 %v1977, %v2091
  %v2093 = vpop.f32.mrb[0].mxu0
  %2094 = vmatprep.mubr.f32.mxu0 0.0
  %v2095 = vand.u32 %v1624, 4294901760
  %v2096 = vsub.f32 %v1624, %v2095
  %v2097 = vand.u32 %v2096, 4294901760
  %2098 = vmatmul.mubr.f32.gmra.mrb[0].mxu0 %v2097
  %v2099 = vpop.f32.mrb[0].mxu0
  %v2100 = vadd.f32 %v1984, %v2099
  %v2101 = vpop.f32.mrb[0].mxu0
  %2102 = vmatprep.mubr.f32.mxu0 0.0
  %v2103 = vand.u32 %v1627, 4294901760
  %v2104 = vsub.f32 %v1627, %v2103
  %v2105 = vand.u32 %v2104, 4294901760
  %2106 = vmatmul.mubr.f32.gmra.mrb[0].mxu0 %v2105
  %v2107 = vpop.f32.mrb[0].mxu0
  %v2108 = vadd.f32 %v1991, %v2107
  %v2109 = vpop.f32.mrb[0].mxu0
  %2110 = vdwg.mxu0
  %2111 = vmatprep.subr.mxu0 0.0
  %v2112 = vand.u32 %v1566, 4294901760
  %v2113 = vsub.f32 %v1566, %v2112
  %v2114 = vand.u32 %v2113, 4294901760
  %2115 = vmatpush1.msra.mxu0 %v2114
  %2116 = vmatprep.subr.mxu0 0.0
  %v2117 = vand.u32 %v1567, 4294901760
  %v2118 = vsub.f32 %v1567, %v2117
  %v2119 = vand.u32 %v2118, 4294901760
  %2120 = vmatpush1.msra.mxu0 %v2119
  %2121 = vmatprep.subr.mxu0 0.0
  %v2122 = vand.u32 %v1568, 4294901760
  %v2123 = vsub.f32 %v1568, %v2122
  %v2124 = vand.u32 %v2123, 4294901760
  %2125 = vmatpush1.msra.mxu0 %v2124
  %2126 = vmatprep.subr.mxu0 0.0
  %v2127 = vand.u32 %v1569, 4294901760
  %v2128 = vsub.f32 %v1569, %v2127
  %v2129 = vand.u32 %v2128, 4294901760
  %2130 = vmatpush1.msra.mxu0 %v2129
  %2131 = vmatprep.subr.mxu0 0.0
  %2132 = vmatpush1.msra.mxu0 0.0
  %2133 = vmatprep.subr.mxu0 0.0
  %2134 = vmatpush1.msra.mxu0 0.0
  %2135 = vmatprep.subr.mxu0 0.0
  %2136 = vmatpush1.msra.mxu0 0.0
  %2137 = vmatprep.subr.mxu0 0.0
  %2138 = vmatpush1.msra.mxu0 0.0
  %2139 = vmatprep.subr.mxu0 0.0
  %2140 = vmatpush1.msra.mxu0 0.0
  %2141 = vmatprep.subr.mxu0 0.0
  %2142 = vmatpush1.msra.mxu0 0.0
  %2143 = vmatprep.subr.mxu0 0.0
  %2144 = vmatpush1.msra.mxu0 0.0
  %2145 = vmatprep.subr.mxu0 0.0
  %2146 = vmatpush1.msra.mxu0 0.0
  %2147 = vmatprep.subr.mxu0 0.0
  %2148 = vmatpush1.msra.mxu0 0.0
  %2149 = vmatprep.subr.mxu0 0.0
  %2150 = vmatpush1.msra.mxu0 0.0
  %2151 = vmatprep.subr.mxu0 0.0
  %2152 = vmatpush1.msra.mxu0 0.0
  %2153 = vmatprep.subr.mxu0 0.0
  %2154 = vmatpush1.msra.mxu0 0.0
  %2155 = vmatprep.subr.mxu0 0.0
  %2156 = vmatpush1.msra.mxu0 0.0
  %2157 = vmatprep.subr.mxu0 0.0
  %2158 = vmatpush1.msra.mxu0 0.0
  %2159 = vmatprep.subr.mxu0 0.0
  %2160 = vmatpush1.msra.mxu0 0.0
  %2161 = vmatprep.subr.mxu0 0.0
  %2162 = vmatpush1.msra.mxu0 0.0
  %2163 = vmatprep.subr.mxu0 0.0
  %2164 = vmatpush1.msra.mxu0 0.0
  %2165 = vmatprep.subr.mxu0 0.0
  %2166 = vmatpush1.msra.mxu0 0.0
  %2167 = vmatprep.subr.mxu0 0.0
  %2168 = vmatpush1.msra.mxu0 0.0
  %2169 = vmatprep.subr.mxu0 0.0
  %2170 = vmatpush1.msra.mxu0 0.0
  %2171 = vmatprep.subr.mxu0 0.0
  %2172 = vmatpush1.msra.mxu0 0.0
  %2173 = vmatprep.subr.mxu0 0.0
  %2174 = vmatpush1.msra.mxu0 0.0
  %2175 = vmatprep.subr.mxu0 0.0
  %2176 = vmatpush1.msra.mxu0 0.0
  %2177 = vmatprep.subr.mxu0 0.0
  %2178 = vmatpush1.msra.mxu0 0.0
  %2179 = vmatprep.subr.mxu0 0.0
  %2180 = vmatpush1.msra.mxu0 0.0
  %2181 = vmatprep.subr.mxu0 0.0
  %2182 = vmatpush1.msra.mxu0 0.0
  %2183 = vmatprep.subr.mxu0 0.0
  %2184 = vmatpush1.msra.mxu0 0.0
  %2185 = vmatprep.subr.mxu0 0.0
  %2186 = vmatpush1.msra.mxu0 0.0
  %2187 = vmatprep.mubr.f32.mxu0 0.0
  %v2188 = vand.u32 %v1612, 4294901760
  %2189 = vmatmul.mubr.f32.gmra.mrb[0].mxu0 %v2188
  %v2190 = vpop.f32.mrb[0].mxu0
  %v2191 = vadd.f32 %v2068, %v2190
  %v2192 = vpop.f32.mrb[0].mxu0
  %2193 = vmatprep.mubr.f32.mxu0 0.0
  %v2194 = vand.u32 %v1615, 4294901760
  %2195 = vmatmul.mubr.f32.gmra.mrb[0].mxu0 %v2194
  %v2196 = vpop.f32.mrb[0].mxu0
  %v2197 = vadd.f32 %v2076, %v2196
  %v2198 = vpop.f32.mrb[0].mxu0
  %2199 = vmatprep.mubr.f32.mxu0 0.0
  %v2200 = vand.u32 %v1618, 4294901760
  %2201 = vmatmul.mubr.f32.gmra.mrb[0].mxu0 %v2200
  %v2202 = vpop.f32.mrb[0].mxu0
  %v2203 = vadd.f32 %v2084, %v2202
  %v2204 = vpop.f32.mrb[0].mxu0
  %2205 = vmatprep.mubr.f32.mxu0 0.0
  %v2206 = vand.u32 %v1621, 4294901760
  %2207 = vmatmul.mubr.f32.gmra.mrb[0].mxu0 %v2206
  %v2208 = vpop.f32.mrb[0].mxu0
  %v2209 = vadd.f32 %v2092, %v2208
  %v2210 = vpop.f32.mrb[0].mxu0
  %2211 = vmatprep.mubr.f32.mxu0 0.0
  %v2212 = vand.u32 %v1624, 4294901760
  %2213 = vmatmul.mubr.f32.gmra.mrb[0].mxu0 %v2212
  %v2214 = vpop.f32.mrb[0].mxu0
  %v2215 = vadd.f32 %v2100, %v2214
  %v2216 = vpop.f32.mrb[0].mxu0
  %2217 = vmatprep.mubr.f32.mxu0 0.0
  %v2218 = vand.u32 %v1627, 4294901760
  %2219 = vmatmul.mubr.f32.gmra.mrb[0].mxu0 %v2218
  %v2220 = vpop.f32.mrb[0].mxu0
  %v2221 = vadd.f32 %v2108, %v2220
  %v2222 = vpop.f32.mrb[0].mxu0
  %2223 = vdwg.mxu0
  %2224 = vmatprep.subr.mxu0 0.0
  %v2225 = vand.u32 %v1566, 4294901760
  %2226 = vmatpush1.msra.mxu0 %v2225
  %2227 = vmatprep.subr.mxu0 0.0
  %v2228 = vand.u32 %v1567, 4294901760
  %2229 = vmatpush1.msra.mxu0 %v2228
  %2230 = vmatprep.subr.mxu0 0.0
  %v2231 = vand.u32 %v1568, 4294901760
  %2232 = vmatpush1.msra.mxu0 %v2231
  %2233 = vmatprep.subr.mxu0 0.0
  %v2234 = vand.u32 %v1569, 4294901760
  %2235 = vmatpush1.msra.mxu0 %v2234
  %2236 = vmatprep.subr.mxu0 0.0
  %2237 = vmatpush1.msra.mxu0 0.0
  %2238 = vmatprep.subr.mxu0 0.0
  %2239 = vmatpush1.msra.mxu0 0.0
  %2240 = vmatprep.subr.mxu0 0.0
  %2241 = vmatpush1.msra.mxu0 0.0
  %2242 = vmatprep.subr.mxu0 0.0
  %2243 = vmatpush1.msra.mxu0 0.0
  %2244 = vmatprep.subr.mxu0 0.0
  %2245 = vmatpush1.msra.mxu0 0.0
  %2246 = vmatprep.subr.mxu0 0.0
  %2247 = vmatpush1.msra.mxu0 0.0
  %2248 = vmatprep.subr.mxu0 0.0
  %2249 = vmatpush1.msra.mxu0 0.0
  %2250 = vmatprep.subr.mxu0 0.0
  %2251 = vmatpush1.msra.mxu0 0.0
  %2252 = vmatprep.subr.mxu0 0.0
  %2253 = vmatpush1.msra.mxu0 0.0
  %2254 = vmatprep.subr.mxu0 0.0
  %2255 = vmatpush1.msra.mxu0 0.0
  %2256 = vmatprep.subr.mxu0 0.0
  %2257 = vmatpush1.msra.mxu0 0.0
  %2258 = vmatprep.subr.mxu0 0.0
  %2259 = vmatpush1.msra.mxu0 0.0
  %2260 = vmatprep.subr.mxu0 0.0
  %2261 = vmatpush1.msra.mxu0 0.0
  %2262 = vmatprep.subr.mxu0 0.0
  %2263 = vmatpush1.msra.mxu0 0.0
  %2264 = vmatprep.subr.mxu0 0.0
  %2265 = vmatpush1.msra.mxu0 0.0
  %2266 = vmatprep.subr.mxu0 0.0
  %2267 = vmatpush1.msra.mxu0 0.0
  %2268 = vmatprep.subr.mxu0 0.0
  %2269 = vmatpush1.msra.mxu0 0.0
  %2270 = vmatprep.subr.mxu0 0.0
  %2271 = vmatpush1.msra.mxu0 0.0
  %2272 = vmatprep.subr.mxu0 0.0
  %2273 = vmatpush1.msra.mxu0 0.0
  %2274 = vmatprep.subr.mxu0 0.0
  %2275 = vmatpush1.msra.mxu0 0.0
  %2276 = vmatprep.subr.mxu0 0.0
  %2277 = vmatpush1.msra.mxu0 0.0
  %2278 = vmatprep.subr.mxu0 0.0
  %2279 = vmatpush1.msra.mxu0 0.0
  %2280 = vmatprep.subr.mxu0 0.0
  %2281 = vmatpush1.msra.mxu0 0.0
  %2282 = vmatprep.subr.mxu0 0.0
  %2283 = vmatpush1.msra.mxu0 0.0
  %2284 = vmatprep.subr.mxu0 0.0
  %2285 = vmatpush1.msra.mxu0 0.0
  %2286 = vmatprep.subr.mxu0 0.0
  %2287 = vmatpush1.msra.mxu0 0.0
  %2288 = vmatprep.subr.mxu0 0.0
  %2289 = vmatpush1.msra.mxu0 0.0
  %2290 = vmatprep.subr.mxu0 0.0
  %2291 = vmatpush1.msra.mxu0 0.0
  %2292 = vmatprep.mubr.f32.mxu0 0.0
  %v2293 = vand.u32 %v1612, 4294901760
  %2294 = vmatmul.mubr.f32.gmra.mrb[0].mxu0 %v2293
  %v2295 = vpop.f32.mrb[0].mxu0
  %v2296 = vadd.f32 %v2191, %v2295
  %v2297 = vpop.f32.mrb[0].mxu0
  %2298 = vmatprep.mubr.f32.mxu0 0.0
  %v2299 = vand.u32 %v1615, 4294901760
  %2300 = vmatmul.mubr.f32.gmra.mrb[0].mxu0 %v2299
  %v2301 = vpop.f32.mrb[0].mxu0
  %v2302 = vadd.f32 %v2197, %v2301
  %v2303 = vpop.f32.mrb[0].mxu0
  %2304 = vmatprep.mubr.f32.mxu0 0.0
  %v2305 = vand.u32 %v1618, 4294901760
  %2306 = vmatmul.mubr.f32.gmra.mrb[0].mxu0 %v2305
  %v2307 = vpop.f32.mrb[0].mxu0
  %v2308 = vadd.f32 %v2203, %v2307
  %v2309 = vpop.f32.mrb[0].mxu0
  %2310 = vmatprep.mubr.f32.mxu0 0.0
  %v2311 = vand.u32 %v1621, 4294901760
  %2312 = vmatmul.mubr.f32.gmra.mrb[0].mxu0 %v2311
  %v2313 = vpop.f32.mrb[0].mxu0
  %v2314 = vadd.f32 %v2209, %v2313
  %v2315 = vpop.f32.mrb[0].mxu0
  %2316 = vmatprep.mubr.f32.mxu0 0.0
  %v2317 = vand.u32 %v1624, 4294901760
  %2318 = vmatmul.mubr.f32.gmra.mrb[0].mxu0 %v2317
  %v2319 = vpop.f32.mrb[0].mxu0
  %v2320 = vadd.f32 %v2215, %v2319
  %v2321 = vpop.f32.mrb[0].mxu0
  %2322 = vmatprep.mubr.f32.mxu0 0.0
  %v2323 = vand.u32 %v1627, 4294901760
  %2324 = vmatmul.mubr.f32.gmra.mrb[0].mxu0 %v2323
  %v2325 = vpop.f32.mrb[0].mxu0
  %v2326 = vadd.f32 %v2221, %v2325
  %v2327 = vpop.f32.mrb[0].mxu0
  %2328 = vdwg.mxu0
  %2329 = vmatprep.subr.mxu0 0.0
  %v2330 = vand.u32 %v1570, 4294901760
  %2331 = vmatpush1.msra.mxu0 %v2330
  %2332 = vmatprep.subr.mxu0 0.0
  %v2333 = vand.u32 %v1571, 4294901760
  %2334 = vmatpush1.msra.mxu0 %v2333
  %2335 = vmatprep.subr.mxu0 0.0
  %v2336 = vand.u32 %v1572, 4294901760
  %2337 = vmatpush1.msra.mxu0 %v2336
  %2338 = vmatprep.subr.mxu0 0.0
  %v2339 = vand.u32 %v1573, 4294901760
  %2340 = vmatpush1.msra.mxu0 %v2339
  %2341 = vmatprep.subr.mxu0 0.0
  %2342 = vmatpush1.msra.mxu0 0.0
  %2343 = vmatprep.subr.mxu0 0.0
  %2344 = vmatpush1.msra.mxu0 0.0
  %2345 = vmatprep.subr.mxu0 0.0
  %2346 = vmatpush1.msra.mxu0 0.0
  %2347 = vmatprep.subr.mxu0 0.0
  %2348 = vmatpush1.msra.mxu0 0.0
  %2349 = vmatprep.subr.mxu0 0.0
  %2350 = vmatpush1.msra.mxu0 0.0
  %2351 = vmatprep.subr.mxu0 0.0
  %2352 = vmatpush1.msra.mxu0 0.0
  %2353 = vmatprep.subr.mxu0 0.0
  %2354 = vmatpush1.msra.mxu0 0.0
  %2355 = vmatprep.subr.mxu0 0.0
  %2356 = vmatpush1.msra.mxu0 0.0
  %2357 = vmatprep.subr.mxu0 0.0
  %2358 = vmatpush1.msra.mxu0 0.0
  %2359 = vmatprep.subr.mxu0 0.0
  %2360 = vmatpush1.msra.mxu0 0.0
  %2361 = vmatprep.subr.mxu0 0.0
  %2362 = vmatpush1.msra.mxu0 0.0
  %2363 = vmatprep.subr.mxu0 0.0
  %2364 = vmatpush1.msra.mxu0 0.0
  %2365 = vmatprep.subr.mxu0 0.0
  %2366 = vmatpush1.msra.mxu0 0.0
  %2367 = vmatprep.subr.mxu0 0.0
  %2368 = vmatpush1.msra.mxu0 0.0
  %2369 = vmatprep.subr.mxu0 0.0
  %2370 = vmatpush1.msra.mxu0 0.0
  %2371 = vmatprep.subr.mxu0 0.0
  %2372 = vmatpush1.msra.mxu0 0.0
  %2373 = vmatprep.subr.mxu0 0.0
  %2374 = vmatpush1.msra.mxu0 0.0
  %2375 = vmatprep.subr.mxu0 0.0
  %2376 = vmatpush1.msra.mxu0 0.0
  %2377 = vmatprep.subr.mxu0 0.0
  %2378 = vmatpush1.msra.mxu0 0.0
  %2379 = vmatprep.subr.mxu0 0.0
  %2380 = vmatpush1.msra.mxu0 0.0
  %2381 = vmatprep.subr.mxu0 0.0
  %2382 = vmatpush1.msra.mxu0 0.0
  %2383 = vmatprep.subr.mxu0 0.0
  %2384 = vmatpush1.msra.mxu0 0.0
  %2385 = vmatprep.subr.mxu0 0.0
  %2386 = vmatpush1.msra.mxu0 0.0
  %2387 = vmatprep.subr.mxu0 0.0
  %2388 = vmatpush1.msra.mxu0 0.0
  %2389 = vmatprep.subr.mxu0 0.0
  %2390 = vmatpush1.msra.mxu0 0.0
  %2391 = vmatprep.subr.mxu0 0.0
  %2392 = vmatpush1.msra.mxu0 0.0
  %2393 = vmatprep.subr.mxu0 0.0
  %2394 = vmatpush1.msra.mxu0 0.0
  %2395 = vmatprep.subr.mxu0 0.0
  %2396 = vmatpush1.msra.mxu0 0.0
  %2397 = vmatprep.mubr.f32.mxu0 0.0
  %v2398 = vand.u32 %v1612, 4294901760
  %v2399 = vsub.f32 %v1612, %v2398
  %v2400 = vand.u32 %v2399, 4294901760
  %v2401 = vsub.f32 %v2399, %v2400
  %v2402 = vand.u32 %v2401, 4294901760
  %2403 = vmatmul.mubr.f32.gmra.mrb[0].mxu0 %v2402
  %v2404 = vpop.f32.mrb[0].mxu0
  %v2405 = vadd.f32 %v1583, %v2404
  %v2406 = vpop.f32.mrb[0].mxu0
  %2407 = vmatprep.mubr.f32.mxu0 0.0
  %v2408 = vand.u32 %v1615, 4294901760
  %v2409 = vsub.f32 %v1615, %v2408
  %v2410 = vand.u32 %v2409, 4294901760
  %v2411 = vsub.f32 %v2409, %v2410
  %v2412 = vand.u32 %v2411, 4294901760
  %2413 = vmatmul.mubr.f32.gmra.mrb[0].mxu0 %v2412
  %v2414 = vpop.f32.mrb[0].mxu0
  %v2415 = vadd.f32 %v1588, %v2414
  %v2416 = vpop.f32.mrb[0].mxu0
  %2417 = vmatprep.mubr.f32.mxu0 0.0
  %v2418 = vand.u32 %v1618, 4294901760
  %v2419 = vsub.f32 %v1618, %v2418
  %v2420 = vand.u32 %v2419, 4294901760
  %v2421 = vsub.f32 %v2419, %v2420
  %v2422 = vand.u32 %v2421, 4294901760
  %2423 = vmatmul.mubr.f32.gmra.mrb[0].mxu0 %v2422
  %v2424 = vpop.f32.mrb[0].mxu0
  %v2425 = vadd.f32 %v1593, %v2424
  %v2426 = vpop.f32.mrb[0].mxu0
  %2427 = vmatprep.mubr.f32.mxu0 0.0
  %v2428 = vand.u32 %v1621, 4294901760
  %v2429 = vsub.f32 %v1621, %v2428
  %v2430 = vand.u32 %v2429, 4294901760
  %v2431 = vsub.f32 %v2429, %v2430
  %v2432 = vand.u32 %v2431, 4294901760
  %2433 = vmatmul.mubr.f32.gmra.mrb[0].mxu0 %v2432
  %v2434 = vpop.f32.mrb[0].mxu0
  %v2435 = vadd.f32 %v1598, %v2434
  %v2436 = vpop.f32.mrb[0].mxu0
  %2437 = vmatprep.mubr.f32.mxu0 0.0
  %v2438 = vand.u32 %v1624, 4294901760
  %v2439 = vsub.f32 %v1624, %v2438
  %v2440 = vand.u32 %v2439, 4294901760
  %v2441 = vsub.f32 %v2439, %v2440
  %v2442 = vand.u32 %v2441, 4294901760
  %2443 = vmatmul.mubr.f32.gmra.mrb[0].mxu0 %v2442
  %v2444 = vpop.f32.mrb[0].mxu0
  %v2445 = vadd.f32 %v1603, %v2444
  %v2446 = vpop.f32.mrb[0].mxu0
  %2447 = vmatprep.mubr.f32.mxu0 0.0
  %v2448 = vand.u32 %v1627, 4294901760
  %v2449 = vsub.f32 %v1627, %v2448
  %v2450 = vand.u32 %v2449, 4294901760
  %v2451 = vsub.f32 %v2449, %v2450
  %v2452 = vand.u32 %v2451, 4294901760
  %2453 = vmatmul.mubr.f32.gmra.mrb[0].mxu0 %v2452
  %v2454 = vpop.f32.mrb[0].mxu0
  %v2455 = vadd.f32 %v1608, %v2454
  %v2456 = vpop.f32.mrb[0].mxu0
  %2457 = vdwg.mxu0
  %2458 = vmatprep.subr.mxu0 0.0
  %v2459 = vand.u32 %v1570, 4294901760
  %v2460 = vsub.f32 %v1570, %v2459
  %v2461 = vand.u32 %v2460, 4294901760
  %v2462 = vsub.f32 %v2460, %v2461
  %v2463 = vand.u32 %v2462, 4294901760
  %2464 = vmatpush1.msra.mxu0 %v2463
  %2465 = vmatprep.subr.mxu0 0.0
  %v2466 = vand.u32 %v1571, 4294901760
  %v2467 = vsub.f32 %v1571, %v2466
  %v2468 = vand.u32 %v2467, 4294901760
  %v2469 = vsub.f32 %v2467, %v2468
  %v2470 = vand.u32 %v2469, 4294901760
  %2471 = vmatpush1.msra.mxu0 %v2470
  %2472 = vmatprep.subr.mxu0 0.0
  %v2473 = vand.u32 %v1572, 4294901760
  %v2474 = vsub.f32 %v1572, %v2473
  %v2475 = vand.u32 %v2474, 4294901760
  %v2476 = vsub.f32 %v2474, %v2475
  %v2477 = vand.u32 %v2476, 4294901760
  %2478 = vmatpush1.msra.mxu0 %v2477
  %2479 = vmatprep.subr.mxu0 0.0
  %v2480 = vand.u32 %v1573, 4294901760
  %v2481 = vsub.f32 %v1573, %v2480
  %v2482 = vand.u32 %v2481, 4294901760
  %v2483 = vsub.f32 %v2481, %v2482
  %v2484 = vand.u32 %v2483, 4294901760
  %2485 = vmatpush1.msra.mxu0 %v2484
  %2486 = vmatprep.subr.mxu0 0.0
  %2487 = vmatpush1.msra.mxu0 0.0
  %2488 = vmatprep.subr.mxu0 0.0
  %2489 = vmatpush1.msra.mxu0 0.0
  %2490 = vmatprep.subr.mxu0 0.0
  %2491 = vmatpush1.msra.mxu0 0.0
  %2492 = vmatprep.subr.mxu0 0.0
  %2493 = vmatpush1.msra.mxu0 0.0
  %2494 = vmatprep.subr.mxu0 0.0
  %2495 = vmatpush1.msra.mxu0 0.0
  %2496 = vmatprep.subr.mxu0 0.0
  %2497 = vmatpush1.msra.mxu0 0.0
  %2498 = vmatprep.subr.mxu0 0.0
  %2499 = vmatpush1.msra.mxu0 0.0
  %2500 = vmatprep.subr.mxu0 0.0
  %2501 = vmatpush1.msra.mxu0 0.0
  %2502 = vmatprep.subr.mxu0 0.0
  %2503 = vmatpush1.msra.mxu0 0.0
  %2504 = vmatprep.subr.mxu0 0.0
  %2505 = vmatpush1.msra.mxu0 0.0
  %2506 = vmatprep.subr.mxu0 0.0
  %2507 = vmatpush1.msra.mxu0 0.0
  %2508 = vmatprep.subr.mxu0 0.0
  %2509 = vmatpush1.msra.mxu0 0.0
  %2510 = vmatprep.subr.mxu0 0.0
  %2511 = vmatpush1.msra.mxu0 0.0
  %2512 = vmatprep.subr.mxu0 0.0
  %2513 = vmatpush1.msra.mxu0 0.0
  %2514 = vmatprep.subr.mxu0 0.0
  %2515 = vmatpush1.msra.mxu0 0.0
  %2516 = vmatprep.subr.mxu0 0.0
  %2517 = vmatpush1.msra.mxu0 0.0
  %2518 = vmatprep.subr.mxu0 0.0
  %2519 = vmatpush1.msra.mxu0 0.0
  %2520 = vmatprep.subr.mxu0 0.0
  %2521 = vmatpush1.msra.mxu0 0.0
  %2522 = vmatprep.subr.mxu0 0.0
  %2523 = vmatpush1.msra.mxu0 0.0
  %2524 = vmatprep.subr.mxu0 0.0
  %2525 = vmatpush1.msra.mxu0 0.0
  %2526 = vmatprep.subr.mxu0 0.0
  %2527 = vmatpush1.msra.mxu0 0.0
  %2528 = vmatprep.subr.mxu0 0.0
  %2529 = vmatpush1.msra.mxu0 0.0
  %2530 = vmatprep.subr.mxu0 0.0
  %2531 = vmatpush1.msra.mxu0 0.0
  %2532 = vmatprep.subr.mxu0 0.0
  %2533 = vmatpush1.msra.mxu0 0.0
  %2534 = vmatprep.subr.mxu0 0.0
  %2535 = vmatpush1.msra.mxu0 0.0
  %2536 = vmatprep.subr.mxu0 0.0
  %2537 = vmatpush1.msra.mxu0 0.0
  %2538 = vmatprep.subr.mxu0 0.0
  %2539 = vmatpush1.msra.mxu0 0.0
  %2540 = vmatprep.subr.mxu0 0.0
  %2541 = vmatpush1.msra.mxu0 0.0
  %2542 = vmatprep.mubr.f32.mxu0 0.0
  %v2543 = vand.u32 %v1612, 4294901760
  %2544 = vmatmul.mubr.f32.gmra.mrb[0].mxu0 %v2543
  %v2545 = vpop.f32.mrb[0].mxu0
  %v2546 = vadd.f32 %v2405, %v2545
  %v2547 = vpop.f32.mrb[0].mxu0
  %2548 = vmatprep.mubr.f32.mxu0 0.0
  %v2549 = vand.u32 %v1615, 4294901760
  %2550 = vmatmul.mubr.f32.gmra.mrb[0].mxu0 %v2549
  %v2551 = vpop.f32.mrb[0].mxu0
  %v2552 = vadd.f32 %v2415, %v2551
  %v2553 = vpop.f32.mrb[0].mxu0
  %2554 = vmatprep.mubr.f32.mxu0 0.0
  %v2555 = vand.u32 %v1618, 4294901760
  %2556 = vmatmul.mubr.f32.gmra.mrb[0].mxu0 %v2555
  %v2557 = vpop.f32.mrb[0].mxu0
  %v2558 = vadd.f32 %v2425, %v2557
  %v2559 = vpop.f32.mrb[0].mxu0
  %2560 = vmatprep.mubr.f32.mxu0 0.0
  %v2561 = vand.u32 %v1621, 4294901760
  %2562 = vmatmul.mubr.f32.gmra.mrb[0].mxu0 %v2561
  %v2563 = vpop.f32.mrb[0].mxu0
  %v2564 = vadd.f32 %v2435, %v2563
  %v2565 = vpop.f32.mrb[0].mxu0
  %2566 = vmatprep.mubr.f32.mxu0 0.0
  %v2567 = vand.u32 %v1624, 4294901760
  %2568 = vmatmul.mubr.f32.gmra.mrb[0].mxu0 %v2567
  %v2569 = vpop.f32.mrb[0].mxu0
  %v2570 = vadd.f32 %v2445, %v2569
  %v2571 = vpop.f32.mrb[0].mxu0
  %2572 = vmatprep.mubr.f32.mxu0 0.0
  %v2573 = vand.u32 %v1627, 4294901760
  %2574 = vmatmul.mubr.f32.gmra.mrb[0].mxu0 %v2573
  %v2575 = vpop.f32.mrb[0].mxu0
  %v2576 = vadd.f32 %v2455, %v2575
  %v2577 = vpop.f32.mrb[0].mxu0
  %2578 = vdwg.mxu0
  %2579 = vmatprep.subr.mxu0 0.0
  %v2580 = vand.u32 %v1570, 4294901760
  %v2581 = vsub.f32 %v1570, %v2580
  %2582 = vmatpush1.msra.mxu0 %v2581
  %2583 = vmatprep.subr.mxu0 0.0
  %v2584 = vand.u32 %v1571, 4294901760
  %v2585 = vsub.f32 %v1571, %v2584
  %2586 = vmatpush1.msra.mxu0 %v2585
  %2587 = vmatprep.subr.mxu0 0.0
  %v2588 = vand.u32 %v1572, 4294901760
  %v2589 = vsub.f32 %v1572, %v2588
  %2590 = vmatpush1.msra.mxu0 %v2589
  %2591 = vmatprep.subr.mxu0 0.0
  %v2592 = vand.u32 %v1573, 4294901760
  %v2593 = vsub.f32 %v1573, %v2592
  %2594 = vmatpush1.msra.mxu0 %v2593
  %2595 = vmatprep.subr.mxu0 0.0
  %2596 = vmatpush1.msra.mxu0 0.0
  %2597 = vmatprep.subr.mxu0 0.0
  %2598 = vmatpush1.msra.mxu0 0.0
  %2599 = vmatprep.subr.mxu0 0.0
  %2600 = vmatpush1.msra.mxu0 0.0
  %2601 = vmatprep.subr.mxu0 0.0
  %2602 = vmatpush1.msra.mxu0 0.0
  %2603 = vmatprep.subr.mxu0 0.0
  %2604 = vmatpush1.msra.mxu0 0.0
  %2605 = vmatprep.subr.mxu0 0.0
  %2606 = vmatpush1.msra.mxu0 0.0
  %2607 = vmatprep.subr.mxu0 0.0
  %2608 = vmatpush1.msra.mxu0 0.0
  %2609 = vmatprep.subr.mxu0 0.0
  %2610 = vmatpush1.msra.mxu0 0.0
  %2611 = vmatprep.subr.mxu0 0.0
  %2612 = vmatpush1.msra.mxu0 0.0
  %2613 = vmatprep.subr.mxu0 0.0
  %2614 = vmatpush1.msra.mxu0 0.0
  %2615 = vmatprep.subr.mxu0 0.0
  %2616 = vmatpush1.msra.mxu0 0.0
  %2617 = vmatprep.subr.mxu0 0.0
  %2618 = vmatpush1.msra.mxu0 0.0
  %2619 = vmatprep.subr.mxu0 0.0
  %2620 = vmatpush1.msra.mxu0 0.0
  %2621 = vmatprep.subr.mxu0 0.0
  %2622 = vmatpush1.msra.mxu0 0.0
  %2623 = vmatprep.subr.mxu0 0.0
  %2624 = vmatpush1.msra.mxu0 0.0
  %2625 = vmatprep.subr.mxu0 0.0
  %2626 = vmatpush1.msra.mxu0 0.0
  %2627 = vmatprep.subr.mxu0 0.0
  %2628 = vmatpush1.msra.mxu0 0.0
  %2629 = vmatprep.subr.mxu0 0.0
  %2630 = vmatpush1.msra.mxu0 0.0
  %2631 = vmatprep.subr.mxu0 0.0
  %2632 = vmatpush1.msra.mxu0 0.0
  %2633 = vmatprep.subr.mxu0 0.0
  %2634 = vmatpush1.msra.mxu0 0.0
  %2635 = vmatprep.subr.mxu0 0.0
  %2636 = vmatpush1.msra.mxu0 0.0
  %2637 = vmatprep.subr.mxu0 0.0
  %2638 = vmatpush1.msra.mxu0 0.0
  %2639 = vmatprep.subr.mxu0 0.0
  %2640 = vmatpush1.msra.mxu0 0.0
  %2641 = vmatprep.subr.mxu0 0.0
  %2642 = vmatpush1.msra.mxu0 0.0
  %2643 = vmatprep.subr.mxu0 0.0
  %2644 = vmatpush1.msra.mxu0 0.0
  %2645 = vmatprep.subr.mxu0 0.0
  %2646 = vmatpush1.msra.mxu0 0.0
  %2647 = vmatprep.subr.mxu0 0.0
  %2648 = vmatpush1.msra.mxu0 0.0
  %2649 = vmatprep.subr.mxu0 0.0
  %2650 = vmatpush1.msra.mxu0 0.0
  %2651 = vmatprep.mubr.f32.mxu0 0.0
  %v2652 = vand.u32 %v1612, 4294901760
  %v2653 = vsub.f32 %v1612, %v2652
  %2654 = vmatmul.mubr.f32.gmra.mrb[0].mxu0 %v2653
  %v2655 = vpop.f32.mrb[0].mxu0
  %v2656 = vadd.f32 %v2546, %v2655
  %v2657 = vpop.f32.mrb[0].mxu0
  %2658 = vmatprep.mubr.f32.mxu0 0.0
  %v2659 = vand.u32 %v1615, 4294901760
  %v2660 = vsub.f32 %v1615, %v2659
  %2661 = vmatmul.mubr.f32.gmra.mrb[0].mxu0 %v2660
  %v2662 = vpop.f32.mrb[0].mxu0
  %v2663 = vadd.f32 %v2552, %v2662
  %v2664 = vpop.f32.mrb[0].mxu0
  %2665 = vmatprep.mubr.f32.mxu0 0.0
  %v2666 = vand.u32 %v1618, 4294901760
  %v2667 = vsub.f32 %v1618, %v2666
  %2668 = vmatmul.mubr.f32.gmra.mrb[0].mxu0 %v2667
  %v2669 = vpop.f32.mrb[0].mxu0
  %v2670 = vadd.f32 %v2558, %v2669
  %v2671 = vpop.f32.mrb[0].mxu0
  %2672 = vmatprep.mubr.f32.mxu0 0.0
  %v2673 = vand.u32 %v1621, 4294901760
  %v2674 = vsub.f32 %v1621, %v2673
  %2675 = vmatmul.mubr.f32.gmra.mrb[0].mxu0 %v2674
  %v2676 = vpop.f32.mrb[0].mxu0
  %v2677 = vadd.f32 %v2564, %v2676
  %v2678 = vpop.f32.mrb[0].mxu0
  %2679 = vmatprep.mubr.f32.mxu0 0.0
  %v2680 = vand.u32 %v1624, 4294901760
  %v2681 = vsub.f32 %v1624, %v2680
  %2682 = vmatmul.mubr.f32.gmra.mrb[0].mxu0 %v2681
  %v2683 = vpop.f32.mrb[0].mxu0
  %v2684 = vadd.f32 %v2570, %v2683
  %v2685 = vpop.f32.mrb[0].mxu0
  %2686 = vmatprep.mubr.f32.mxu0 0.0
  %v2687 = vand.u32 %v1627, 4294901760
  %v2688 = vsub.f32 %v1627, %v2687
  %2689 = vmatmul.mubr.f32.gmra.mrb[0].mxu0 %v2688
  %v2690 = vpop.f32.mrb[0].mxu0
  %v2691 = vadd.f32 %v2576, %v2690
  %v2692 = vpop.f32.mrb[0].mxu0
  %2693 = vdwg.mxu0
  %2694 = vmatprep.subr.mxu0 0.0
  %v2695 = vand.u32 %v1570, 4294901760
  %2696 = vmatpush1.msra.mxu0 %v2695
  %2697 = vmatprep.subr.mxu0 0.0
  %v2698 = vand.u32 %v1571, 4294901760
  %2699 = vmatpush1.msra.mxu0 %v2698
  %2700 = vmatprep.subr.mxu0 0.0
  %v2701 = vand.u32 %v1572, 4294901760
  %2702 = vmatpush1.msra.mxu0 %v2701
  %2703 = vmatprep.subr.mxu0 0.0
  %v2704 = vand.u32 %v1573, 4294901760
  %2705 = vmatpush1.msra.mxu0 %v2704
  %2706 = vmatprep.subr.mxu0 0.0
  %2707 = vmatpush1.msra.mxu0 0.0
  %2708 = vmatprep.subr.mxu0 0.0
  %2709 = vmatpush1.msra.mxu0 0.0
  %2710 = vmatprep.subr.mxu0 0.0
  %2711 = vmatpush1.msra.mxu0 0.0
  %2712 = vmatprep.subr.mxu0 0.0
  %2713 = vmatpush1.msra.mxu0 0.0
  %2714 = vmatprep.subr.mxu0 0.0
  %2715 = vmatpush1.msra.mxu0 0.0
  %2716 = vmatprep.subr.mxu0 0.0
  %2717 = vmatpush1.msra.mxu0 0.0
  %2718 = vmatprep.subr.mxu0 0.0
  %2719 = vmatpush1.msra.mxu0 0.0
  %2720 = vmatprep.subr.mxu0 0.0
  %2721 = vmatpush1.msra.mxu0 0.0
  %2722 = vmatprep.subr.mxu0 0.0
  %2723 = vmatpush1.msra.mxu0 0.0
  %2724 = vmatprep.subr.mxu0 0.0
  %2725 = vmatpush1.msra.mxu0 0.0
  %2726 = vmatprep.subr.mxu0 0.0
  %2727 = vmatpush1.msra.mxu0 0.0
  %2728 = vmatprep.subr.mxu0 0.0
  %2729 = vmatpush1.msra.mxu0 0.0
  %2730 = vmatprep.subr.mxu0 0.0
  %2731 = vmatpush1.msra.mxu0 0.0
  %2732 = vmatprep.subr.mxu0 0.0
  %2733 = vmatpush1.msra.mxu0 0.0
  %2734 = vmatprep.subr.mxu0 0.0
  %2735 = vmatpush1.msra.mxu0 0.0
  %2736 = vmatprep.subr.mxu0 0.0
  %2737 = vmatpush1.msra.mxu0 0.0
  %2738 = vmatprep.subr.mxu0 0.0
  %2739 = vmatpush1.msra.mxu0 0.0
  %2740 = vmatprep.subr.mxu0 0.0
  %2741 = vmatpush1.msra.mxu0 0.0
  %2742 = vmatprep.subr.mxu0 0.0
  %2743 = vmatpush1.msra.mxu0 0.0
  %2744 = vmatprep.subr.mxu0 0.0
  %2745 = vmatpush1.msra.mxu0 0.0
  %2746 = vmatprep.subr.mxu0 0.0
  %2747 = vmatpush1.msra.mxu0 0.0
  %2748 = vmatprep.subr.mxu0 0.0
  %2749 = vmatpush1.msra.mxu0 0.0
  %2750 = vmatprep.subr.mxu0 0.0
  %2751 = vmatpush1.msra.mxu0 0.0
  %2752 = vmatprep.subr.mxu0 0.0
  %2753 = vmatpush1.msra.mxu0 0.0
  %2754 = vmatprep.subr.mxu0 0.0
  %2755 = vmatpush1.msra.mxu0 0.0
  %2756 = vmatprep.subr.mxu0 0.0
  %2757 = vmatpush1.msra.mxu0 0.0
  %2758 = vmatprep.subr.mxu0 0.0
  %2759 = vmatpush1.msra.mxu0 0.0
  %2760 = vmatprep.subr.mxu0 0.0
  %2761 = vmatpush1.msra.mxu0 0.0
  %2762 = vmatprep.mubr.f32.mxu0 0.0
  %v2763 = vand.u32 %v1612, 4294901760
  %v2764 = vsub.f32 %v1612, %v2763
  %v2765 = vand.u32 %v2764, 4294901760
  %2766 = vmatmul.mubr.f32.gmra.mrb[0].mxu0 %v2765
  %v2767 = vpop.f32.mrb[0].mxu0
  %v2768 = vadd.f32 %v2656, %v2767
  %v2769 = vpop.f32.mrb[0].mxu0
  %2770 = vmatprep.mubr.f32.mxu0 0.0
  %v2771 = vand.u32 %v1615, 4294901760
  %v2772 = vsub.f32 %v1615, %v2771
  %v2773 = vand.u32 %v2772, 4294901760
  %2774 = vmatmul.mubr.f32.gmra.mrb[0].mxu0 %v2773
  %v2775 = vpop.f32.mrb[0].mxu0
  %v2776 = vadd.f32 %v2663, %v2775
  %v2777 = vpop.f32.mrb[0].mxu0
  %2778 = vmatprep.mubr.f32.mxu0 0.0
  %v2779 = vand.u32 %v1618, 4294901760
  %v2780 = vsub.f32 %v1618, %v2779
  %v2781 = vand.u32 %v2780, 4294901760
  %2782 = vmatmul.mubr.f32.gmra.mrb[0].mxu0 %v2781
  %v2783 = vpop.f32.mrb[0].mxu0
  %v2784 = vadd.f32 %v2670, %v2783
  %v2785 = vpop.f32.mrb[0].mxu0
  %2786 = vmatprep.mubr.f32.mxu0 0.0
  %v2787 = vand.u32 %v1621, 4294901760
  %v2788 = vsub.f32 %v1621, %v2787
  %v2789 = vand.u32 %v2788, 4294901760
  %2790 = vmatmul.mubr.f32.gmra.mrb[0].mxu0 %v2789
  %v2791 = vpop.f32.mrb[0].mxu0
  %v2792 = vadd.f32 %v2677, %v2791
  %v2793 = vpop.f32.mrb[0].mxu0
  %2794 = vmatprep.mubr.f32.mxu0 0.0
  %v2795 = vand.u32 %v1624, 4294901760
  %v2796 = vsub.f32 %v1624, %v2795
  %v2797 = vand.u32 %v2796, 4294901760
  %2798 = vmatmul.mubr.f32.gmra.mrb[0].mxu0 %v2797
  %v2799 = vpop.f32.mrb[0].mxu0
  %v2800 = vadd.f32 %v2684, %v2799
  %v2801 = vpop.f32.mrb[0].mxu0
  %2802 = vmatprep.mubr.f32.mxu0 0.0
  %v2803 = vand.u32 %v1627, 4294901760
  %v2804 = vsub.f32 %v1627, %v2803
  %v2805 = vand.u32 %v2804, 4294901760
  %2806 = vmatmul.mubr.f32.gmra.mrb[0].mxu0 %v2805
  %v2807 = vpop.f32.mrb[0].mxu0
  %v2808 = vadd.f32 %v2691, %v2807
  %v2809 = vpop.f32.mrb[0].mxu0
  %2810 = vdwg.mxu0
  %2811 = vmatprep.subr.mxu0 0.0
  %v2812 = vand.u32 %v1570, 4294901760
  %v2813 = vsub.f32 %v1570, %v2812
  %v2814 = vand.u32 %v2813, 4294901760
  %2815 = vmatpush1.msra.mxu0 %v2814
  %2816 = vmatprep.subr.mxu0 0.0
  %v2817 = vand.u32 %v1571, 4294901760
  %v2818 = vsub.f32 %v1571, %v2817
  %v2819 = vand.u32 %v2818, 4294901760
  %2820 = vmatpush1.msra.mxu0 %v2819
  %2821 = vmatprep.subr.mxu0 0.0
  %v2822 = vand.u32 %v1572, 4294901760
  %v2823 = vsub.f32 %v1572, %v2822
  %v2824 = vand.u32 %v2823, 4294901760
  %2825 = vmatpush1.msra.mxu0 %v2824
  %2826 = vmatprep.subr.mxu0 0.0
  %v2827 = vand.u32 %v1573, 4294901760
  %v2828 = vsub.f32 %v1573, %v2827
  %v2829 = vand.u32 %v2828, 4294901760
  %2830 = vmatpush1.msra.mxu0 %v2829
  %2831 = vmatprep.subr.mxu0 0.0
  %2832 = vmatpush1.msra.mxu0 0.0
  %2833 = vmatprep.subr.mxu0 0.0
  %2834 = vmatpush1.msra.mxu0 0.0
  %2835 = vmatprep.subr.mxu0 0.0
  %2836 = vmatpush1.msra.mxu0 0.0
  %2837 = vmatprep.subr.mxu0 0.0
  %2838 = vmatpush1.msra.mxu0 0.0
  %2839 = vmatprep.subr.mxu0 0.0
  %2840 = vmatpush1.msra.mxu0 0.0
  %2841 = vmatprep.subr.mxu0 0.0
  %2842 = vmatpush1.msra.mxu0 0.0
  %2843 = vmatprep.subr.mxu0 0.0
  %2844 = vmatpush1.msra.mxu0 0.0
  %2845 = vmatprep.subr.mxu0 0.0
  %2846 = vmatpush1.msra.mxu0 0.0
  %2847 = vmatprep.subr.mxu0 0.0
  %2848 = vmatpush1.msra.mxu0 0.0
  %2849 = vmatprep.subr.mxu0 0.0
  %2850 = vmatpush1.msra.mxu0 0.0
  %2851 = vmatprep.subr.mxu0 0.0
  %2852 = vmatpush1.msra.mxu0 0.0
  %2853 = vmatprep.subr.mxu0 0.0
  %2854 = vmatpush1.msra.mxu0 0.0
  %2855 = vmatprep.subr.mxu0 0.0
  %2856 = vmatpush1.msra.mxu0 0.0
  %2857 = vmatprep.subr.mxu0 0.0
  %2858 = vmatpush1.msra.mxu0 0.0
  %2859 = vmatprep.subr.mxu0 0.0
  %2860 = vmatpush1.msra.mxu0 0.0
  %2861 = vmatprep.subr.mxu0 0.0
  %2862 = vmatpush1.msra.mxu0 0.0
  %2863 = vmatprep.subr.mxu0 0.0
  %2864 = vmatpush1.msra.mxu0 0.0
  %2865 = vmatprep.subr.mxu0 0.0
  %2866 = vmatpush1.msra.mxu0 0.0
  %2867 = vmatprep.subr.mxu0 0.0
  %2868 = vmatpush1.msra.mxu0 0.0
  %2869 = vmatprep.subr.mxu0 0.0
  %2870 = vmatpush1.msra.mxu0 0.0
  %2871 = vmatprep.subr.mxu0 0.0
  %2872 = vmatpush1.msra.mxu0 0.0
  %2873 = vmatprep.subr.mxu0 0.0
  %2874 = vmatpush1.msra.mxu0 0.0
  %2875 = vmatprep.subr.mxu0 0.0
  %2876 = vmatpush1.msra.mxu0 0.0
  %2877 = vmatprep.subr.mxu0 0.0
  %2878 = vmatpush1.msra.mxu0 0.0
  %2879 = vmatprep.subr.mxu0 0.0
  %2880 = vmatpush1.msra.mxu0 0.0
  %2881 = vmatprep.subr.mxu0 0.0
  %2882 = vmatpush1.msra.mxu0 0.0
  %2883 = vmatprep.subr.mxu0 0.0
  %2884 = vmatpush1.msra.mxu0 0.0
  %2885 = vmatprep.subr.mxu0 0.0
  %2886 = vmatpush1.msra.mxu0 0.0
  %2887 = vmatprep.mubr.f32.mxu0 0.0
  %v2888 = vand.u32 %v1612, 4294901760
  %2889 = vmatmul.mubr.f32.gmra.mrb[0].mxu0 %v2888
  %v2890 = vpop.f32.mrb[0].mxu0
  %v2891 = vadd.f32 %v2768, %v2890
  %v2892 = vpop.f32.mrb[0].mxu0
  %2893 = vmatprep.mubr.f32.mxu0 0.0
  %v2894 = vand.u32 %v1615, 4294901760
  %2895 = vmatmul.mubr.f32.gmra.mrb[0].mxu0 %v2894
  %v2896 = vpop.f32.mrb[0].mxu0
  %v2897 = vadd.f32 %v2776, %v2896
  %v2898 = vpop.f32.mrb[0].mxu0
  %2899 = vmatprep.mubr.f32.mxu0 0.0
  %v2900 = vand.u32 %v1618, 4294901760
  %2901 = vmatmul.mubr.f32.gmra.mrb[0].mxu0 %v2900
  %v2902 = vpop.f32.mrb[0].mxu0
  %v2903 = vadd.f32 %v2784, %v2902
  %v2904 = vpop.f32.mrb[0].mxu0
  %2905 = vmatprep.mubr.f32.mxu0 0.0
  %v2906 = vand.u32 %v1621, 4294901760
  %2907 = vmatmul.mubr.f32.gmra.mrb[0].mxu0 %v2906
  %v2908 = vpop.f32.mrb[0].mxu0
  %v2909 = vadd.f32 %v2792, %v2908
  %v2910 = vpop.f32.mrb[0].mxu0
  %2911 = vmatprep.mubr.f32.mxu0 0.0
  %v2912 = vand.u32 %v1624, 4294901760
  %2913 = vmatmul.mubr.f32.gmra.mrb[0].mxu0 %v2912
  %v2914 = vpop.f32.mrb[0].mxu0
  %v2915 = vadd.f32 %v2800, %v2914
  %v2916 = vpop.f32.mrb[0].mxu0
  %2917 = vmatprep.mubr.f32.mxu0 0.0
  %v2918 = vand.u32 %v1627, 4294901760
  %2919 = vmatmul.mubr.f32.gmra.mrb[0].mxu0 %v2918
  %v2920 = vpop.f32.mrb[0].mxu0
  %v2921 = vadd.f32 %v2808, %v2920
  %v2922 = vpop.f32.mrb[0].mxu0
  %2923 = vdwg.mxu0
  %2924 = vmatprep.subr.mxu0 0.0
  %v2925 = vand.u32 %v1570, 4294901760
  %2926 = vmatpush1.msra.mxu0 %v2925
  %2927 = vmatprep.subr.mxu0 0.0
  %v2928 = vand.u32 %v1571, 4294901760
  %2929 = vmatpush1.msra.mxu0 %v2928
  %2930 = vmatprep.subr.mxu0 0.0
  %v2931 = vand.u32 %v1572, 4294901760
  %2932 = vmatpush1.msra.mxu0 %v2931
  %2933 = vmatprep.subr.mxu0 0.0
  %v2934 = vand.u32 %v1573, 4294901760
  %2935 = vmatpush1.msra.mxu0 %v2934
  %2936 = vmatprep.subr.mxu0 0.0
  %2937 = vmatpush1.msra.mxu0 0.0
  %2938 = vmatprep.subr.mxu0 0.0
  %2939 = vmatpush1.msra.mxu0 0.0
  %2940 = vmatprep.subr.mxu0 0.0
  %2941 = vmatpush1.msra.mxu0 0.0
  %2942 = vmatprep.subr.mxu0 0.0
  %2943 = vmatpush1.msra.mxu0 0.0
  %2944 = vmatprep.subr.mxu0 0.0
  %2945 = vmatpush1.msra.mxu0 0.0
  %2946 = vmatprep.subr.mxu0 0.0
  %2947 = vmatpush1.msra.mxu0 0.0
  %2948 = vmatprep.subr.mxu0 0.0
  %2949 = vmatpush1.msra.mxu0 0.0
  %2950 = vmatprep.subr.mxu0 0.0
  %2951 = vmatpush1.msra.mxu0 0.0
  %2952 = vmatprep.subr.mxu0 0.0
  %2953 = vmatpush1.msra.mxu0 0.0
  %2954 = vmatprep.subr.mxu0 0.0
  %2955 = vmatpush1.msra.mxu0 0.0
  %2956 = vmatprep.subr.mxu0 0.0
  %2957 = vmatpush1.msra.mxu0 0.0
  %2958 = vmatprep.subr.mxu0 0.0
  %2959 = vmatpush1.msra.mxu0 0.0
  %2960 = vmatprep.subr.mxu0 0.0
  %2961 = vmatpush1.msra.mxu0 0.0
  %2962 = vmatprep.subr.mxu0 0.0
  %2963 = vmatpush1.msra.mxu0 0.0
  %2964 = vmatprep.subr.mxu0 0.0
  %2965 = vmatpush1.msra.mxu0 0.0
  %2966 = vmatprep.subr.mxu0 0.0
  %2967 = vmatpush1.msra.mxu0 0.0
  %2968 = vmatprep.subr.mxu0 0.0
  %2969 = vmatpush1.msra.mxu0 0.0
  %2970 = vmatprep.subr.mxu0 0.0
  %2971 = vmatpush1.msra.mxu0 0.0
  %2972 = vmatprep.subr.mxu0 0.0
  %2973 = vmatpush1.msra.mxu0 0.0
  %2974 = vmatprep.subr.mxu0 0.0
  %2975 = vmatpush1.msra.mxu0 0.0
  %2976 = vmatprep.subr.mxu0 0.0
  %2977 = vmatpush1.msra.mxu0 0.0
  %2978 = vmatprep.subr.mxu0 0.0
  %2979 = vmatpush1.msra.mxu0 0.0
  %2980 = vmatprep.subr.mxu0 0.0
  %2981 = vmatpush1.msra.mxu0 0.0
  %2982 = vmatprep.subr.mxu0 0.0
  %2983 = vmatpush1.msra.mxu0 0.0
  %2984 = vmatprep.subr.mxu0 0.0
  %2985 = vmatpush1.msra.mxu0 0.0
  %2986 = vmatprep.subr.mxu0 0.0
  %2987 = vmatpush1.msra.mxu0 0.0
  %2988 = vmatprep.subr.mxu0 0.0
  %2989 = vmatpush1.msra.mxu0 0.0
  %2990 = vmatprep.subr.mxu0 0.0
  %2991 = vmatpush1.msra.mxu0 0.0
  %2992 = vmatprep.mubr.f32.mxu0 0.0
  %v2993 = vand.u32 %v1612, 4294901760
  %2994 = vmatmul.mubr.f32.gmra.mrb[0].mxu0 %v2993
  %v2995 = vpop.f32.mrb[0].mxu0
  %v2996 = vadd.f32 %v2891, %v2995
  %v2997 = vpop.f32.mrb[0].mxu0
  %2998 = vmatprep.mubr.f32.mxu0 0.0
  %v2999 = vand.u32 %v1615, 4294901760
  %3000 = vmatmul.mubr.f32.gmra.mrb[0].mxu0 %v2999
  %v3001 = vpop.f32.mrb[0].mxu0
  %v3002 = vadd.f32 %v2897, %v3001
  %v3003 = vpop.f32.mrb[0].mxu0
  %3004 = vmatprep.mubr.f32.mxu0 0.0
  %v3005 = vand.u32 %v1618, 4294901760
  %3006 = vmatmul.mubr.f32.gmra.mrb[0].mxu0 %v3005
  %v3007 = vpop.f32.mrb[0].mxu0
  %v3008 = vadd.f32 %v2903, %v3007
  %v3009 = vpop.f32.mrb[0].mxu0
  %3010 = vmatprep.mubr.f32.mxu0 0.0
  %v3011 = vand.u32 %v1621, 4294901760
  %3012 = vmatmul.mubr.f32.gmra.mrb[0].mxu0 %v3011
  %v3013 = vpop.f32.mrb[0].mxu0
  %v3014 = vadd.f32 %v2909, %v3013
  %v3015 = vpop.f32.mrb[0].mxu0
  %3016 = vmatprep.mubr.f32.mxu0 0.0
  %v3017 = vand.u32 %v1624, 4294901760
  %3018 = vmatmul.mubr.f32.gmra.mrb[0].mxu0 %v3017
  %v3019 = vpop.f32.mrb[0].mxu0
  %v3020 = vadd.f32 %v2915, %v3019
  %v3021 = vpop.f32.mrb[0].mxu0
  %3022 = vmatprep.mubr.f32.mxu0 0.0
  %v3023 = vand.u32 %v1627, 4294901760
  %3024 = vmatmul.mubr.f32.gmra.mrb[0].mxu0 %v3023
  %v3025 = vpop.f32.mrb[0].mxu0
  %v3026 = vadd.f32 %v2921, %v3025
  %v3027 = vpop.f32.mrb[0].mxu0
  %3028 = vdwg.mxu0
  %v3029 = vmul.f32 %v2296, 0.5
  %v3030 = vmul.f32 %v2302, 0.5
  %v3031 = vmul.f32 %v2308, 0.5
  %v3032 = vmul.f32 %v2314, 0.5
  %v3033 = vmul.f32 %v2320, 0.5
  %v3034 = vmul.f32 %v2326, 0.5
  %v3035 = vmul.f32 %v2996, 0.5
  %v3036 = vmul.f32 %v3002, 0.5
  %v3037 = vmul.f32 %v3008, 0.5
  %v3038 = vmul.f32 %v3014, 0.5
  %v3039 = vmul.f32 %v3020, 0.5
  %v3040 = vmul.f32 %v3026, 0.5
  %v3041 = vmul.f32 %v2296, 0.70710677
  %v3042 = vmul.f32 %v2302, 0.70710677
  %v3043 = vmul.f32 %v2308, 0.70710677
  %v3044 = vmul.f32 %v2314, 0.70710677
  %v3045 = vmul.f32 %v2320, 0.70710677
  %v3046 = vmul.f32 %v2326, 0.70710677
  %v3047 = vmul.f32 %v2996, 0.70710677
  %v3048 = vmul.f32 %v3002, 0.70710677
  %v3049 = vmul.f32 %v3008, 0.70710677
  %v3050 = vmul.f32 %v3014, 0.70710677
  %v3051 = vmul.f32 %v3020, 0.70710677
  %v3052 = vmul.f32 %v3026, 0.70710677
  %v3053 = verf.f32.pop %v3041
  %v3054 = verf.f32.pop %v3042
  %v3055 = verf.f32.pop %v3043
  %v3056 = verf.f32.pop %v3044
  %v3057 = verf.f32.pop %v3045
  %v3058 = verf.f32.pop %v3046
  %v3059 = verf.f32.pop %v3047
  %v3060 = verf.f32.pop %v3048
  %v3061 = verf.f32.pop %v3049
  %v3062 = verf.f32.pop %v3050
  %v3063 = verf.f32.pop %v3051
  %v3064 = verf.f32.pop %v3052
  %v3065 = vadd.f32 %v3053, 1.0
  %v3066 = vadd.f32 %v3054, 1.0
  %v3067 = vadd.f32 %v3055, 1.0
  %v3068 = vadd.f32 %v3056, 1.0
  %v3069 = vadd.f32 %v3057, 1.0
  %v3070 = vadd.f32 %v3058, 1.0
  %v3071 = vadd.f32 %v3059, 1.0
  %v3072 = vadd.f32 %v3060, 1.0
  %v3073 = vadd.f32 %v3061, 1.0
  %v3074 = vadd.f32 %v3062, 1.0
  %v3075 = vadd.f32 %v3063, 1.0
  %v3076 = vadd.f32 %v3064, 1.0
  %v3077 = vmul.f32 %v3029, %v3065
  %v3078 = vmul.f32 %v3030, %v3066
  %v3079 = vmul.f32 %v3031, %v3067
  %v3080 = vmul.f32 %v3032, %v3068
  %v3081 = vmul.f32 %v3033, %v3069
  %v3082 = vmul.f32 %v3034, %v3070
  %v3083 = vmul.f32 %v3035, %v3071
  %v3084 = vmul.f32 %v3036, %v3072
  %v3085 = vmul.f32 %v3037, %v3073
  %v3086 = vmul.f32 %v3038, %v3074
  %v3087 = vmul.f32 %v3039, %v3075
  %v3088 = vmul.f32 %v3040, %v3076
  %v3089 = vmul.f32 %v3077, %v187
  %v3090 = vmul.f32 %v3078, %v187
  %v3091 = vmul.f32 %v3079, %v187
  %v3092 = vmul.f32 %v3080, %v187
  %v3093 = vmul.f32 %v3081, %v187
  %v3094 = vmul.f32 %v3082, %v187
  %v3095 = vmul.f32 %v3083, %v188
  %v3096 = vmul.f32 %v3084, %v188
  %v3097 = vmul.f32 %v3085, %v188
  %v3098 = vmul.f32 %v3086, %v188
  %v3099 = vmul.f32 %v3087, %v188
  %v3100 = vmul.f32 %v3088, %v188
  %v3101 = vadd.f32 %v3089, %v95
  %v3102 = vadd.f32 %v3090, %v95
  %v3103 = vadd.f32 %v3091, %v95
  %v3104 = vadd.f32 %v3092, %v95
  %v3105 = vadd.f32 %v3093, %v95
  %v3106 = vadd.f32 %v3094, %v95
  %v3107 = vadd.f32 %v3095, %v96
  %v3108 = vadd.f32 %v3096, %v96
  %v3109 = vadd.f32 %v3097, %v96
  %v3110 = vadd.f32 %v3098, %v96
  %v3111 = vadd.f32 %v3099, %v96
  %v3112 = vadd.f32 %v3100, %v96
  %3113 = vst.msk [vmem:[%s5] sm:$0xff] %vm32, %v3101
  %3114 = vst.msk [vmem:[%s5 + $0x8] sm:$0xff] %vm32, %v3102
  %3115 = vst.msk [vmem:[%s5 + $0x10] sm:$0xff] %vm32, %v3103
  %3116 = vst.msk [vmem:[%s5 + $0x18] sm:$0xff] %vm32, %v3104
  %3117 = vst.msk [vmem:[%s5 + $0x20] sm:$0xff] %vm32, %v3105
  %3118 = vst.msk [vmem:[%s5 + $0x28] sm:$0x1f] %vm48, %v3106
  %3119 = vst.msk [vmem:[%s5 + $0x30] sm:$0xff] %vm32, %v3107
  %3120 = vst.msk [vmem:[%s5 + $0x38] sm:$0xff] %vm32, %v3108
  %3121 = vst.msk [vmem:[%s5 + $0x40] sm:$0xff] %vm32, %v3109
  %3122 = vst.msk [vmem:[%s5 + $0x48] sm:$0xff] %vm32, %v3110
  %3123 = vst.msk [vmem:[%s5 + $0x50] sm:$0xff] %vm32, %v3111
  %3124 = vst.msk [vmem:[%s5 + $0x58] sm:$0x1f] %vm48, %v3112
  // Predicated region
  $region22: #{mlp_forward.1} parent=0 // pred_check
    _
  $region23: #{mlp_forward.1} parent=0 // pred_check_branch
    %3126 = sbr.rel (0) target = $region25
  $region24: #{mlp_forward.1} parent=0 // pred_region
    _
  $region25: #{mlp_forward.1} parent=0 // pred_fallthru
    _
  // Predicated region
  $region26: #{mlp_forward.1} parent=0 // pred_check
    _
  $region27: #{mlp_forward.1} parent=0 // pred_check_branch
    %3128 = sbr.rel (0) target = $region29
  $region28: #{mlp_forward.1} parent=0 // pred_region
    _
  $region29: #{mlp_forward.1} parent=0 // pred_fallthru
    _

</llo_original>
